<compile_context>
chip_gen: v7x
topology: tpu7x:2x2x1
jax: 0.10.0
libtpu: 0.0.40
codegen_flags: <defaults>
</compile_context>

<pallas_src>
import functools

import jax
import jax.numpy as jnp
from jax.experimental import pallas as pl
from jax.experimental.pallas import tpu as pltpu


# ----------------------------- Pallas kernel ------------------------------- #
def _conv_bn_relu_kernel(x_ref, w_ref, scale_ref, shift_ref, o_ref, *,
                         kh, kw, stride, th, ow, cin):
    # x_ref:     (Hp, Wp, Cin)  bf16  padded NHWC image (whole image in VMEM)
    # w_ref:     (K, tn)        bf16  reshaped conv weight tile, K = KH*KW*Cin
    # scale_ref: (1, tn)        f32   gamma / sqrt(running_var + eps)
    # shift_ref: (1, tn)        f32   beta - running_mean * scale
    # o_ref:     (th, OW, tn)   bf16  output tile (th output rows)
    r = pl.program_id(1)
    row0 = r * (th * stride)

    # Implicit GEMM: gather the KH*KW taps for this tile of `th` output rows
    # straight from the image resident in VMEM and build the patch matrix on
    # the fly (never materialized in HBM).
    taps = []
    for i in range(kh):
        for j in range(kw):
            if stride == 1:
                tap = x_ref[pl.ds(row0 + i, th), pl.ds(j, ow), :]
            else:
                tap = x_ref[pl.ds(row0 + i, th, stride),
                            pl.ds(j, ow, stride), :]
            taps.append(tap)                                   # (th, ow, cin)
    patches = jnp.concatenate(taps, axis=-1)                   # (th, ow, K)
    patches = patches.reshape(th * ow, kh * kw * cin)          # (tm, K)

    # Single-K-step path: one MXU contraction over the full K, straight into
    # the fused BN + ReLU epilogue and a single store (no accumulator).
    y = jnp.dot(patches, w_ref[...], preferred_element_type=jnp.float32)
    y = y * scale_ref[...] + shift_ref[...]                    # folded BN (eval)
    y = jnp.maximum(y, 0.0)                                    # ReLU
    o_ref[...] = y.reshape(th, ow, -1).astype(o_ref.dtype)


# ----------------------------- tiling policy ------------------------------- #
def _round_up(x, m):
    return (x + m - 1) // m * m


def _vmem_capacity_bytes():
    try:
        return int(pltpu.get_tpu_info().vmem_capacity_bytes)
    except Exception:
        return 64 * 1024 * 1024      # conservative (v7x physical VMEM)


def _choose_cout_tile(cout):
    """Lane-dense Cout tiling: pad to a multiple of 128, tile at <= 512."""
    cp = _round_up(cout, 128)
    if cp <= 512:
        return cp, cp
    for tn in (512, 384, 256, 128):
        if cp % tn == 0:
            return tn, cp
    return 128, cp


def _choose_row_tile(oh, ow, cin, k, tn, kh, stride, wp,
                     tm_target=1024, vmem_budget=40 * 1024 * 1024):
    """Largest divisor of OH s.t. th*OW <= tm_target and the tile fits VMEM."""
    best = 1
    for th in range(1, oh + 1):
        if oh % th:
            continue
        tm = th * ow
        if th > 1 and tm > tm_target:
            continue
        th_in = (th - 1) * stride + kh
        need = (tm * k * 2            # in-kernel patch matrix (bf16)
                + 2 * k * tn * 2      # double-buffered weight tile (bf16)
                + 2 * tm * tn * 2     # double-buffered output tile (bf16)
                + tm * tn * 4         # f32 epilogue value
                + th_in * wp * cin * 2)
        if need <= vmem_budget:
            best = th
    return best


# ------------------------------ fused op ----------------------------------- #
@functools.partial(jax.jit, static_argnames=("kh", "kw", "stride", "padding"))
def conv_bn_relu(x, weight, gamma, beta, running_mean, running_var, *,
                 kh, kw, stride, padding):
    """x: (N, Cin, H, W) f32 -> (N, Cout, OH, OW) f32 (eval-mode Conv+BN+ReLU)."""
    eps = 1e-5
    n, cin, h, w = x.shape
    cout = weight.shape[0]
    oh = (h + 2 * padding - kh) // stride + 1
    ow = (w + 2 * padding - kw) // stride + 1
    hp, wp = h + 2 * padding, w + 2 * padding
    k = kh * kw * cin

    # NHWC bf16 activation stream (see module-level TODO on NHWC end-to-end).
    x_nhwc = jnp.transpose(x, (0, 2, 3, 1)).astype(jnp.bfloat16)
    if padding:
        x_nhwc = jnp.pad(x_nhwc,
                         ((0, 0), (padding, padding), (padding, padding), (0, 0)))

    tn, cp = _choose_cout_tile(cout)
    th = _choose_row_tile(oh, ow, cin, k, tn, kh, stride, wp)

    # (Cout, Cin, KH, KW) -> (KH, KW, Cin, Cout) -> (KH*KW*Cin, Cout); this row
    # order matches the in-kernel tap order (i, j, c).  Only Cout is padded.
    w2d = jnp.transpose(weight, (2, 3, 1, 0)).reshape(k, cout).astype(jnp.bfloat16)
    scale = gamma / jnp.sqrt(running_var + eps)
    shift = beta - running_mean * scale
    if cp != cout:
        w2d = jnp.pad(w2d, ((0, 0), (0, cp - cout)))
        scale = jnp.pad(scale, (0, cp - cout))
        shift = jnp.pad(shift, (0, cp - cout))
    scale = scale.reshape(1, cp).astype(jnp.float32)
    shift = shift.reshape(1, cp).astype(jnp.float32)

    grid = (n, oh // th, cp // tn)
    kernel = functools.partial(_conv_bn_relu_kernel, kh=kh, kw=kw,
                               stride=stride, th=th, ow=ow, cin=cin)

    cost = pl.CostEstimate(
        flops=2 * n * oh * ow * k * cp,
        transcendentals=0,
        bytes_accessed=(n * hp * wp * cin * 2 + k * cp * 2
                        + n * oh * ow * cp * 2 + 2 * cp * 4),
    )

    tm = th * ow
    img_bytes = hp * wp * cin * 2
    vmem_need = (2 * img_bytes + 2 * k * tn * 2 + 2 * tm * tn * 2
                 + tm * k * 2 + tm * tn * 4 + 4 * tn * 4)
    cp_kwargs = dict(dimension_semantics=("parallel", "parallel", "parallel"))
    if vmem_need > 12 * 1024 * 1024:
        cap = int(0.75 * _vmem_capacity_bytes())     # v7x-safe (<= 48 MiB there)
        cp_kwargs["vmem_limit_bytes"] = min(int(vmem_need * 3 // 2), cap)

    out = pl.pallas_call(
        kernel,
        out_shape=jax.ShapeDtypeStruct((n, oh, ow, cp), jnp.bfloat16),
        grid_spec=pltpu.PrefetchScalarGridSpec(
            num_scalar_prefetch=0,
            grid=grid,
            in_specs=[
                # Whole padded image per batch element; index depends only on
                # the n axis, so it is DMA'd once per image (implicit GEMM).
                pl.BlockSpec((None, hp, wp, cin), lambda ni, ri, ji: (ni, 0, 0, 0)),
                pl.BlockSpec((k, tn), lambda ni, ri, ji: (0, ji)),
                pl.BlockSpec((1, tn), lambda ni, ri, ji: (0, ji)),
                pl.BlockSpec((1, tn), lambda ni, ri, ji: (0, ji)),
            ],
            out_specs=pl.BlockSpec((None, th, ow, tn),
                                   lambda ni, ri, ji: (ni, ri, 0, ji)),
        ),
        compiler_params=pltpu.CompilerParams(**cp_kwargs),
        cost_estimate=cost,
    )(x_nhwc, w2d, scale, shift)

    if cp != cout:
        out = out[..., :cout]
    # Back to NCHW f32 to preserve the PyTorch module's interface.
    return jnp.transpose(out, (0, 3, 1, 2)).astype(jnp.float32)


# ------------------------------ module glue -------------------------------- #
class ConvBlockPallas:
    """Mirror of PyTorch _ConvBlock (Conv2d(bias=False) + BatchNorm2d + ReLU), eval mode."""

    def __init__(self, in_channels, out_channels, kernel_size, stride=1,
                 padding=0, *, key):
        self.cin, self.cout = in_channels, out_channels
        self.kh = self.kw = kernel_size
        self.stride, self.padding = stride, padding
        self.eps = 1e-5
        k_w, k_g, k_b, k_m, k_v = jax.random.split(key, 5)
        # Conv2d weight: (Cout, Cin, KH, KW), no bias.
        self.weight = jax.random.normal(
            k_w, (out_channels, in_channels, kernel_size, kernel_size),
            jnp.float32) * 0.1
        # BatchNorm2d params + running stats (deterministic synthetic values).
        self.gamma = 1.0 + 0.1 * jax.random.normal(k_g, (out_channels,), jnp.float32)
        self.beta = 0.1 * jax.random.normal(k_b, (out_channels,), jnp.float32)
        self.running_mean = 0.1 * jax.random.normal(k_m, (out_channels,), jnp.float32)
        self.running_var = jnp.abs(
            1.0 + 0.1 * jax.random.normal(k_v, (out_channels,), jnp.float32))

    def __call__(self, x):
        return conv_bn_relu(x, self.weight, self.gamma, self.beta,
                            self.running_mean, self.running_var,
                            kh=self.kh, kw=self.kw, stride=self.stride,
                            padding=self.padding)


# ------------------------------ reference ----------------------------------- #
def _reference(block, x):
    y = jax.lax.conv_general_dilated(
        x, block.weight,
        window_strides=(block.stride, block.stride),
        padding=[(block.padding, block.padding)] * 2,
        dimension_numbers=("NCHW", "OIHW", "NCHW"))
    scale = block.gamma / jnp.sqrt(block.running_var + block.eps)
    shift = block.beta - block.running_mean * scale
    y = y * scale[None, :, None, None] + shift[None, :, None, None]
    return jnp.maximum(y, 0.0)


if __name__ == "__main__":
    key = jax.random.PRNGKey(0)
    k_x, k_p = jax.random.split(key)

    # Small shapes consistent with the module: N=2, Cin=4, H=W=16, Cout=8, k=3, pad=1.
    x = jax.random.normal(k_x, (2, 4, 16, 16), jnp.float32)
    block = ConvBlockPallas(in_channels=4, out_channels=8, kernel_size=3,
                            stride=1, padding=1, key=k_p)

    out = jax.block_until_ready(block(x))
    ref = jax.block_until_ready(_reference(block, x))

    assert out.shape == (2, 8, 16, 16), out.shape
    err = float(jnp.max(jnp.abs(out - ref)))
    # bf16 activation/weight/output streaming (f32 accumulation) => not bit-parity.
    assert err < 5e-2, err

    print("KERNEL_OK")
</pallas_src>

<mosaic_0001>
module attributes {stable_mosaic.version = 11 : i64} {
  func.func @_conv_bn_relu_kernel(%arg0: i32, %arg1: i32, %arg2: i32, %arg3: memref<1x18x18x4xbf16, #tpu.memory_space<vmem>>, %arg4: memref<36x128xbf16, #tpu.memory_space<vmem>>, %arg5: memref<1x128xf32, #tpu.memory_space<vmem>>, %arg6: memref<1x128xf32, #tpu.memory_space<vmem>>, %arg7: memref<1x16x16x128xbf16, #tpu.memory_space<vmem>>) attributes {dimension_semantics = [#tpu.dimension_semantics<parallel>, #tpu.dimension_semantics<parallel>, #tpu.dimension_semantics<parallel>], iteration_bounds = array<i64: 2, 1, 1>, scalar_prefetch = 0 : i64, scratch_operands = 0 : i64, tpu.core_type = #tpu.core_type<tc>, window_params = [{transform_indices = @transform_0, window_bounds = array<i64: 1, 18, 18, 4>}, {transform_indices = @transform_1, window_bounds = array<i64: 36, 128>}, {transform_indices = @transform_2, window_bounds = array<i64: 1, 128>}, {transform_indices = @transform_3, window_bounds = array<i64: 1, 128>}, {transform_indices = @transform_4, window_bounds = array<i64: 1, 16, 16, 128>}]} {
    %c16_i32 = arith.constant 16 : i32
    %0 = arith.muli %arg1, %c16_i32 : i32
    %c0_i32 = arith.constant 0 : i32
    %1 = arith.addi %0, %c0_i32 : i32
    %c0 = arith.constant 0 : index
    %2 = arith.index_cast %1 : i32 to index
    %c0_0 = arith.constant 0 : index
    %c0_1 = arith.constant 0 : index
    %3 = vector.load %arg3[%c0, %2, %c0_0, %c0_1] : memref<1x18x18x4xbf16, #tpu.memory_space<vmem>>, vector<1x16x16x4xbf16>
    %4 = vector.shape_cast %3 : vector<1x16x16x4xbf16> to vector<16x16x4xbf16>
    %c0_i32_2 = arith.constant 0 : i32
    %5 = arith.addi %0, %c0_i32_2 : i32
    %c0_3 = arith.constant 0 : index
    %6 = arith.index_cast %5 : i32 to index
    %c1 = arith.constant 1 : index
    %c0_4 = arith.constant 0 : index
    %7 = vector.load %arg3[%c0_3, %6, %c1, %c0_4] : memref<1x18x18x4xbf16, #tpu.memory_space<vmem>>, vector<1x16x16x4xbf16>
    %8 = vector.shape_cast %7 : vector<1x16x16x4xbf16> to vector<16x16x4xbf16>
    %c0_i32_5 = arith.constant 0 : i32
    %9 = arith.addi %0, %c0_i32_5 : i32
    %c0_6 = arith.constant 0 : index
    %10 = arith.index_cast %9 : i32 to index
    %c2 = arith.constant 2 : index
    %c0_7 = arith.constant 0 : index
    %11 = vector.load %arg3[%c0_6, %10, %c2, %c0_7] : memref<1x18x18x4xbf16, #tpu.memory_space<vmem>>, vector<1x16x16x4xbf16>
    %12 = vector.shape_cast %11 : vector<1x16x16x4xbf16> to vector<16x16x4xbf16>
    %c1_i32 = arith.constant 1 : i32
    %13 = arith.addi %0, %c1_i32 : i32
    %c0_8 = arith.constant 0 : index
    %14 = arith.index_cast %13 : i32 to index
    %c0_9 = arith.constant 0 : index
    %c0_10 = arith.constant 0 : index
    %15 = vector.load %arg3[%c0_8, %14, %c0_9, %c0_10] : memref<1x18x18x4xbf16, #tpu.memory_space<vmem>>, vector<1x16x16x4xbf16>
    %16 = vector.shape_cast %15 : vector<1x16x16x4xbf16> to vector<16x16x4xbf16>
    %c1_i32_11 = arith.constant 1 : i32
    %17 = arith.addi %0, %c1_i32_11 : i32
    %c0_12 = arith.constant 0 : index
    %18 = arith.index_cast %17 : i32 to index
    %c1_13 = arith.constant 1 : index
    %c0_14 = arith.constant 0 : index
    %19 = vector.load %arg3[%c0_12, %18, %c1_13, %c0_14] : memref<1x18x18x4xbf16, #tpu.memory_space<vmem>>, vector<1x16x16x4xbf16>
    %20 = vector.shape_cast %19 : vector<1x16x16x4xbf16> to vector<16x16x4xbf16>
    %c1_i32_15 = arith.constant 1 : i32
    %21 = arith.addi %0, %c1_i32_15 : i32
    %c0_16 = arith.constant 0 : index
    %22 = arith.index_cast %21 : i32 to index
    %c2_17 = arith.constant 2 : index
    %c0_18 = arith.constant 0 : index
    %23 = vector.load %arg3[%c0_16, %22, %c2_17, %c0_18] : memref<1x18x18x4xbf16, #tpu.memory_space<vmem>>, vector<1x16x16x4xbf16>
    %24 = vector.shape_cast %23 : vector<1x16x16x4xbf16> to vector<16x16x4xbf16>
    %c2_i32 = arith.constant 2 : i32
    %25 = arith.addi %0, %c2_i32 : i32
    %c0_19 = arith.constant 0 : index
    %26 = arith.index_cast %25 : i32 to index
    %c0_20 = arith.constant 0 : index
    %c0_21 = arith.constant 0 : index
    %27 = vector.load %arg3[%c0_19, %26, %c0_20, %c0_21] : memref<1x18x18x4xbf16, #tpu.memory_space<vmem>>, vector<1x16x16x4xbf16>
    %28 = vector.shape_cast %27 : vector<1x16x16x4xbf16> to vector<16x16x4xbf16>
    %c2_i32_22 = arith.constant 2 : i32
    %29 = arith.addi %0, %c2_i32_22 : i32
    %c0_23 = arith.constant 0 : index
    %30 = arith.index_cast %29 : i32 to index
    %c1_24 = arith.constant 1 : index
    %c0_25 = arith.constant 0 : index
    %31 = vector.load %arg3[%c0_23, %30, %c1_24, %c0_25] : memref<1x18x18x4xbf16, #tpu.memory_space<vmem>>, vector<1x16x16x4xbf16>
    %32 = vector.shape_cast %31 : vector<1x16x16x4xbf16> to vector<16x16x4xbf16>
    %c2_i32_26 = arith.constant 2 : i32
    %33 = arith.addi %0, %c2_i32_26 : i32
    %c0_27 = arith.constant 0 : index
    %34 = arith.index_cast %33 : i32 to index
    %c2_28 = arith.constant 2 : index
    %c0_29 = arith.constant 0 : index
    %35 = vector.load %arg3[%c0_27, %34, %c2_28, %c0_29] : memref<1x18x18x4xbf16, #tpu.memory_space<vmem>>, vector<1x16x16x4xbf16>
    %36 = vector.shape_cast %35 : vector<1x16x16x4xbf16> to vector<16x16x4xbf16>
    %37 = tpu.concatenate %4, %8, %12, %16, %20, %24, %28, %32, %36 in 2 : vector<16x16x4xbf16>, vector<16x16x4xbf16>, vector<16x16x4xbf16>, vector<16x16x4xbf16>, vector<16x16x4xbf16>, vector<16x16x4xbf16>, vector<16x16x4xbf16>, vector<16x16x4xbf16>, vector<16x16x4xbf16> -> vector<16x16x36xbf16>
    %38 = vector.shape_cast %37 : vector<16x16x36xbf16> to vector<256x36xbf16>
    %c0_30 = arith.constant 0 : index
    %c0_31 = arith.constant 0 : index
    %39 = vector.load %arg4[%c0_30, %c0_31] : memref<36x128xbf16, #tpu.memory_space<vmem>>, vector<36x128xbf16>
    %cst = arith.constant dense<0.000000e+00> : vector<256x128xf32>
    %40 = tpu.matmul %38, %39, %cst {dimension_numbers = #tpu.dot_dimension_numbers<[1], [0], [0], [1], [0, 0, 1, 1], [], []>} : vector<256x36xbf16>, vector<36x128xbf16>, vector<256x128xf32> -> vector<256x128xf32>
    %c0_32 = arith.constant 0 : index
    %c0_33 = arith.constant 0 : index
    %41 = vector.load %arg5[%c0_32, %c0_33] : memref<1x128xf32, #tpu.memory_space<vmem>>, vector<1x128xf32>
    %42 = vector.broadcast %41 : vector<1x128xf32> to vector<256x128xf32>
    %43 = arith.mulf %40, %42 : vector<256x128xf32>
    %c0_34 = arith.constant 0 : index
    %c0_35 = arith.constant 0 : index
    %44 = vector.load %arg6[%c0_34, %c0_35] : memref<1x128xf32, #tpu.memory_space<vmem>>, vector<1x128xf32>
    %45 = vector.broadcast %44 : vector<1x128xf32> to vector<256x128xf32>
    %46 = arith.addf %43, %45 : vector<256x128xf32>
    %cst_36 = arith.constant 0.000000e+00 : f32
    %47 = vector.broadcast %cst_36 : f32 to vector<256x128xf32>
    %48 = arith.maximumf %46, %47 : vector<256x128xf32>
    %49 = vector.shape_cast %48 : vector<256x128xf32> to vector<16x16x128xf32>
    %50 = arith.truncf %49 : vector<16x16x128xf32> to vector<16x16x128xbf16>
    %c0_37 = arith.constant 0 : index
    %c0_38 = arith.constant 0 : index
    %c0_39 = arith.constant 0 : index
    %c0_40 = arith.constant 0 : index
    %51 = vector.load %arg7[%c0_37, %c0_38, %c0_39, %c0_40] : memref<1x16x16x128xbf16, #tpu.memory_space<vmem>>, vector<1x16x16x128xbf16>
    %52 = vector.shape_cast %51 : vector<1x16x16x128xbf16> to vector<16x16x128xbf16>
    %53 = vector.shape_cast %50 : vector<16x16x128xbf16> to vector<1x16x16x128xbf16>
    tpu.vector_store %arg7[%c0_37, %c0_38, %c0_39, %c0_40], %53 {strides = array<i32>} : memref<1x16x16x128xbf16, #tpu.memory_space<vmem>>, vector<1x16x16x128xbf16>,
    return
  }
  func.func @transform_0(%arg0: i32, %arg1: i32, %arg2: i32) -> (i32, i32, i32, i32) {
    %c0_i32 = arith.constant 0 : i32
    %c0_i32_0 = arith.constant 0 : i32
    %c0_i32_1 = arith.constant 0 : i32
    %c0_i32_2 = arith.constant 0 : i32
    return %arg0, %c0_i32, %c0_i32_0, %c0_i32_1 : i32, i32, i32, i32
  }
  func.func @transform_1(%arg0: i32, %arg1: i32, %arg2: i32) -> (i32, i32) {
    %c0_i32 = arith.constant 0 : i32
    %c0_i32_0 = arith.constant 0 : i32
    return %c0_i32, %arg2 : i32, i32
  }
  func.func @transform_2(%arg0: i32, %arg1: i32, %arg2: i32) -> (i32, i32) {
    %c0_i32 = arith.constant 0 : i32
    %c0_i32_0 = arith.constant 0 : i32
    return %c0_i32, %arg2 : i32, i32
  }
  func.func @transform_3(%arg0: i32, %arg1: i32, %arg2: i32) -> (i32, i32) {
    %c0_i32 = arith.constant 0 : i32
    %c0_i32_0 = arith.constant 0 : i32
    return %c0_i32, %arg2 : i32, i32
  }
  func.func @transform_4(%arg0: i32, %arg1: i32, %arg2: i32) -> (i32, i32, i32, i32) {
    %c0_i32 = arith.constant 0 : i32
    %c0_i32_0 = arith.constant 0 : i32
    return %arg0, %arg1, %c0_i32, %arg2 : i32, i32, i32, i32
  }
}

</mosaic_0001>

<llo_original>
// kernel: conv_bn_relu.1
$region0: #{conv_bn_relu.1}
  #allocation0 [shape = 'u32[]', space=smem, size = 0x4, offset = 0x4, fixed_abs, tag = 'smem constant byte address 0x4 - core index']
  #allocation1 [shape = 'u32[144,128]{1,0:T(1,128)}', space=vmem, size = 0x12000, scoped, tag = 'internal scratch']
  %s0 = inlined_call_operand.vmem [shape: bf16[2,18,18,4], index: 0, kind: input, shape index: {}]
  %s1 = inlined_call_operand.vmem [shape: bf16[36,128], index: 1, kind: input, shape index: {}]
  %s2 = inlined_call_operand.vmem [shape: f32[1,128], index: 2, kind: input, shape index: {}]
  %s3 = inlined_call_operand.vmem [shape: f32[1,128], index: 3, kind: input, shape index: {}]
  %s4 = inlined_call_operand.vmem [shape: bf16[2,16,16,128], index: 4, kind: output, shape index: {}]
  %s5 = sld [smem:[#allocation0]]
  $region49: #{conv_bn_relu.1} parent=0
    _
  %s7 = ssub.s32 1, %s5
  %s8 = scalar_select 0, %s7, %s5
  loop: start=0, step=1, limit=4
  $region2: #{conv_bn_relu.1} parent=0 // loop_pre_header
    _
  $region3: #{conv_bn_relu.1} parent=0 // loop_header
    %s10 = sphi 0, %s14
    %p11 = scmp.ge.s32.totalorder %s10, 4
    %s17 = sphi 0, %s36
    %s18 = sphi 0, %s32
    %s19 = sphi 0, %s28
    %s20 = sphi 0, %s17
    %s21 = sphi 0, %s18
    %s22 = sphi 0, %s19
    %s23 = sphi 0, %s20
    %s24 = sphi 0, %s21
    %s25 = sphi 0, %s22
    %s39 = sphi 0, %s41
    %s42 = sphi 0, %s39
    %s43 = sphi 0, %s42
    %s59 = sphi 0, %s43
    %s65 = sphi 0, %s67
    %s68 = sphi 0, %s65
    %s69 = sphi 0, %s68
    %s85 = sphi 0, %s69
    %s91 = sphi 0, %s93
    %s94 = sphi 0, %s91
    %s95 = sphi 0, %s94
    %s111 = sphi 0, %s95
    %s117 = sphi 0, %s119
    %s120 = sphi 0, %s117
    %s121 = sphi 0, %s120
    %s137 = sphi 0, %s121
    %s147 = sphi 0, %s149
    %s150 = sphi 0, %s147
    %s151 = sphi 0, %s150
    %s167 = sphi 0, %s151
  $region4: #{conv_bn_relu.1} parent=0 // loop_header_branch
    %13 = sbr.rel (%p11) target = $region8
  $region5: #{conv_bn_relu.1} parent=0 // loop_body
    %s15 = ssub.s32 %s10, 1
    %s16 = ssub.s32 %s10, 2
    %s26 = sadd.s32 1, %s19
    %p27 = scmp.ge.s32.totalorder %s26, 1
    %s28 = scalar_select %p27, 0, %s26
    %s29 = sadd.s32 1, %s18
    %s30 = scalar_select %p27, %s29, %s18
    %p31 = scmp.ge.s32.totalorder %s30, 1
    %s32 = scalar_select %p31, 0, %s30
    %s33 = sadd.s32 1, %s17
    %s34 = scalar_select %p31, %s33, %s17
    %p35 = scmp.ge.s32.totalorder %s34, 2
    %s36 = scalar_select %p35, 0, %s34
    %s37 = ssub.s32 %s17, %s36
    %p38 = scmp.eq.s32.totalorder %s37, 0
    %s40 = sadd.s32 %s39, 1
    %s41 = scalar_select %p38, %s39, %s40
    %p44 = pneg %p38
    %p45 = scmp.eq.s32.totalorder %s10, 1
    %p46 = por %p44, %p45
    %p47 = scmp.ne.s32.totalorder %s39, %s42
    %p48 = scmp.eq.s32.totalorder %s10, 0
    %p49 = por %p47, %p48
    %p50 = scmp.ne.s32.totalorder %s39, %s42
    %p51 = scmp.eq.s32.totalorder %s15, 1
    %p52 = por %p50, %p51
    %p53 = scmp.ne.s32.totalorder %s42, %s43
    %p54 = scmp.eq.s32.totalorder %s15, 0
    %p55 = por %p53, %p54
    %p56 = scmp.ne.s32.totalorder %s42, %s43
    %p57 = scmp.eq.s32.totalorder %s16, 1
    %p58 = por %p56, %p57
    %p60 = scmp.ne.s32.totalorder %s43, %s59
    %p61 = scmp.eq.s32.totalorder %s16, 0
    %p62 = por %p60, %p61
    %s63 = ssub.s32 %s19, %s28
    %p64 = scmp.eq.s32.totalorder %s63, 0
    %s66 = sadd.s32 %s65, 1
    %s67 = scalar_select %p64, %s65, %s66
    %p70 = pneg %p64
    %p71 = scmp.eq.s32.totalorder %s10, 1
    %p72 = por %p70, %p71
    %p73 = scmp.ne.s32.totalorder %s65, %s68
    %p74 = scmp.eq.s32.totalorder %s10, 0
    %p75 = por %p73, %p74
    %p76 = scmp.ne.s32.totalorder %s65, %s68
    %p77 = scmp.eq.s32.totalorder %s15, 1
    %p78 = por %p76, %p77
    %p79 = scmp.ne.s32.totalorder %s68, %s69
    %p80 = scmp.eq.s32.totalorder %s15, 0
    %p81 = por %p79, %p80
    %p82 = scmp.ne.s32.totalorder %s68, %s69
    %p83 = scmp.eq.s32.totalorder %s16, 1
    %p84 = por %p82, %p83
    %p86 = scmp.ne.s32.totalorder %s69, %s85
    %p87 = scmp.eq.s32.totalorder %s16, 0
    %p88 = por %p86, %p87
    %s89 = ssub.s32 %s19, %s28
    %p90 = scmp.eq.s32.totalorder %s89, 0
    %s92 = sadd.s32 %s91, 1
    %s93 = scalar_select %p90, %s91, %s92
    %p96 = pneg %p90
    %p97 = scmp.eq.s32.totalorder %s10, 1
    %p98 = por %p96, %p97
    %p99 = scmp.ne.s32.totalorder %s91, %s94
    %p100 = scmp.eq.s32.totalorder %s10, 0
    %p101 = por %p99, %p100
    %p102 = scmp.ne.s32.totalorder %s91, %s94
    %p103 = scmp.eq.s32.totalorder %s15, 1
    %p104 = por %p102, %p103
    %p105 = scmp.ne.s32.totalorder %s94, %s95
    %p106 = scmp.eq.s32.totalorder %s15, 0
    %p107 = por %p105, %p106
    %p108 = scmp.ne.s32.totalorder %s94, %s95
    %p109 = scmp.eq.s32.totalorder %s16, 1
    %p110 = por %p108, %p109
    %p112 = scmp.ne.s32.totalorder %s95, %s111
    %p113 = scmp.eq.s32.totalorder %s16, 0
    %p114 = por %p112, %p113
    %s115 = ssub.s32 %s19, %s28
    %p116 = scmp.eq.s32.totalorder %s115, 0
    %s118 = sadd.s32 %s117, 1
    %s119 = scalar_select %p116, %s117, %s118
    %p122 = pneg %p116
    %p123 = scmp.eq.s32.totalorder %s10, 1
    %p124 = por %p122, %p123
    %p125 = scmp.ne.s32.totalorder %s117, %s120
    %p126 = scmp.eq.s32.totalorder %s10, 0
    %p127 = por %p125, %p126
    %p128 = scmp.ne.s32.totalorder %s117, %s120
    %p129 = scmp.eq.s32.totalorder %s15, 1
    %p130 = por %p128, %p129
    %p131 = scmp.ne.s32.totalorder %s120, %s121
    %p132 = scmp.eq.s32.totalorder %s15, 0
    %p133 = por %p131, %p132
    %p134 = scmp.ne.s32.totalorder %s120, %s121
    %p135 = scmp.eq.s32.totalorder %s16, 1
    %p136 = por %p134, %p135
    %p138 = scmp.ne.s32.totalorder %s121, %s137
    %p139 = scmp.eq.s32.totalorder %s16, 0
    %p140 = por %p138, %p139
    %s141 = ssub.s32 %s17, %s36
    %s142 = ssub.s32 %s18, %s32
    %s143 = sor.u32 %s141, %s142
    %s144 = ssub.s32 %s19, %s28
    %s145 = sor.u32 %s143, %s144
    %p146 = scmp.eq.s32.totalorder %s145, 0
    %s148 = sadd.s32 %s147, 1
    %s149 = scalar_select %p146, %s147, %s148
    %p152 = pneg %p146
    %p153 = scmp.eq.s32.totalorder %s10, 1
    %p154 = por %p152, %p153
    %p155 = scmp.ne.s32.totalorder %s147, %s150
    %p156 = scmp.eq.s32.totalorder %s10, 0
    %p157 = por %p155, %p156
    %p158 = scmp.ne.s32.totalorder %s147, %s150
    %p159 = scmp.eq.s32.totalorder %s15, 1
    %p160 = por %p158, %p159
    %p161 = scmp.ne.s32.totalorder %s150, %s151
    %p162 = scmp.eq.s32.totalorder %s15, 0
    %p163 = por %p161, %p162
    %p164 = scmp.ne.s32.totalorder %s150, %s151
    %p165 = scmp.eq.s32.totalorder %s16, 1
    %p166 = por %p164, %p165
    %p168 = scmp.ne.s32.totalorder %s151, %s167
    %p169 = scmp.eq.s32.totalorder %s16, 0
    %p170 = por %p168, %p169
    %p171 = scmp.le.s32.totalorder 1, %s10
    %p172 = scmp.lt.s32.totalorder %s10, 3
    %p173 = pnand %p171, %p172
    %p174 = pneg %p173
    // Predicated region
    $region9: #{conv_bn_relu.1} parent=5 // pred_check
      _
    $region10: #{conv_bn_relu.1} parent=5 // pred_check_branch
      %176 = sbr.rel (%p173) target = $region12
    $region11: #{conv_bn_relu.1} parent=5 // pred_region
      %s177 = ssub.s32 %s10, 1
      // Predicated region
      $region13: #{conv_bn_relu.1} parent=11 // pred_check
        %p178 = pneg %p81
      $region14: #{conv_bn_relu.1} parent=11 // pred_check_branch
        %180 = sbr.rel (%p178) target = $region16
      $region15: #{conv_bn_relu.1} parent=11 // pred_region
        %p181 = scmp.lt.s32.totalorder %s22, 0
        %s182 = scalar_select %p181, %s22, 0
        %s183 = smul.addr %s182, 4
        %s184 = scalar_lea.vmem %s1, %s183
      $region16: #{conv_bn_relu.1} parent=11 // pred_fallthru
        _
      // Predicated region
      $region17: #{conv_bn_relu.1} parent=11 // pred_check
        %p185 = pneg %p107
      $region18: #{conv_bn_relu.1} parent=11 // pred_check_branch
        %187 = sbr.rel (%p185) target = $region20
      $region19: #{conv_bn_relu.1} parent=11 // pred_region
        %p188 = scmp.lt.s32.totalorder %s22, 0
        %s189 = scalar_select %p188, %s22, 0
        %s190 = scalar_lea.vmem %s2, %s189
      $region20: #{conv_bn_relu.1} parent=11 // pred_fallthru
        _
      // Predicated region
      $region21: #{conv_bn_relu.1} parent=11 // pred_check
        %p191 = pneg %p133
      $region22: #{conv_bn_relu.1} parent=11 // pred_check_branch
        %193 = sbr.rel (%p191) target = $region24
      $region23: #{conv_bn_relu.1} parent=11 // pred_region
        %p194 = scmp.lt.s32.totalorder %s22, 0
        %s195 = scalar_select %p194, %s22, 0
        %s196 = scalar_lea.vmem %s3, %s195
      $region24: #{conv_bn_relu.1} parent=11 // pred_fallthru
        _
    $region12: #{conv_bn_relu.1} parent=5 // pred_fallthru
      _
    %p197 = scmp.lt.s32.totalorder %s10, 2
    // Predicated region
    $region25: #{conv_bn_relu.1} parent=5 // pred_check
      %p198 = pneg %p197
    $region26: #{conv_bn_relu.1} parent=5 // pred_check_branch
      %200 = sbr.rel (%p198) target = $region28
    $region27: #{conv_bn_relu.1} parent=5 // pred_region
      // Predicated region
      $region29: #{conv_bn_relu.1} parent=27 // pred_check
        %p201 = pneg %p49
      $region30: #{conv_bn_relu.1} parent=27 // pred_check_branch
        %203 = sbr.rel (%p201) target = $region32
      $region31: #{conv_bn_relu.1} parent=27 // pred_region
        %p204 = scmp.lt.s32.totalorder %s17, 1
        %s205 = scalar_select %p204, %s17, 1
        %s206 = smul.addr %s205, 54
        %s207 = smul.addr %s206, 4
        %s208 = scalar_lea.vmem %s0, %s207
      $region32: #{conv_bn_relu.1} parent=27 // pred_fallthru
        _
    $region28: #{conv_bn_relu.1} parent=5 // pred_fallthru
      _
    %p209 = scmp.le.s32.totalorder 1, %s10
    %p210 = scmp.lt.s32.totalorder %s10, 3
    %p211 = pnand %p209, %p210
    %p212 = pneg %p211
    // Predicated region
    $region33: #{conv_bn_relu.1} parent=5 // pred_check
      _
    $region34: #{conv_bn_relu.1} parent=5 // pred_check_branch
      %214 = sbr.rel (%p211) target = $region36
    $region35: #{conv_bn_relu.1} parent=5 // pred_region
      %s215 = ssub.s32 %s10, 1
      %p216 = scmp.lt.s32.totalorder %s20, 1
      %s217 = scalar_select %p216, %s20, 1
      %s218 = smul.addr %s217, 54
      %s219 = smul.addr %s218, 4
      %s220 = scalar_lea.vmem %s0, %s219
      %p221 = pneg %p55
      %p222 = pneg %p52
      %p223 = scmp.lt.s32.totalorder %s22, 0
      %s224 = scalar_select %p223, %s22, 0
      %s225 = smul.addr %s224, 4
      %s226 = scalar_lea.vmem %s1, %s225
      %p227 = pneg %p81
      %p228 = pneg %p78
      %p229 = scmp.lt.s32.totalorder %s22, 0
      %s230 = scalar_select %p229, %s22, 0
      %s231 = scalar_lea.vmem %s2, %s230
      %p232 = pneg %p107
      %p233 = pneg %p104
      %p234 = scmp.lt.s32.totalorder %s22, 0
      %s235 = scalar_select %p234, %s22, 0
      %s236 = scalar_lea.vmem %s3, %s235
      %p237 = pneg %p133
      %p238 = pneg %p130
      %p239 = pneg %p163
      %p240 = pneg %p160
      %s241 = smul.u32 16, %s21
      %p242 = scmp.lt.s32.totalorder %s20, 1
      %s243 = scalar_select %p242, %s20, 1
      %p244 = scmp.lt.s32.totalorder %s241, 15
      %s245 = scalar_select %p244, %s241, 15
      %p246 = scmp.lt.s32.totalorder %s22, 0
      %s247 = scalar_select %p246, %s22, 0
      %s248 = smul.addr %s245, 2
      %s249 = sadd.s32 %s247, %s248
      %s250 = smul.addr %s243, 32
      %s251 = sadd.s32 %s249, %s250
      %s252 = smul.addr %s251, 4
      %s253 = scalar_lea.vmem %s4, %s252
      %p254 = scmp.lt.s32.totalorder %s20, 1
      %s255 = scalar_select %p254, %s20, 1
      %s256 = smul.addr %s255, 54
      %s257 = smul.addr %s256, 4
      %s258 = scalar_lea.vmem %s0, %s257
      %p259 = scmp.lt.s32.totalorder %s22, 0
      %s260 = scalar_select %p259, %s22, 0
      %s261 = smul.addr %s260, 4
      %s262 = scalar_lea.vmem %s1, %s261
      %p263 = scmp.lt.s32.totalorder %s22, 0
      %s264 = scalar_select %p263, %s22, 0
      %s265 = scalar_lea.vmem %s2, %s264
      %p266 = scmp.lt.s32.totalorder %s22, 0
      %s267 = scalar_select %p266, %s22, 0
      %s268 = scalar_lea.vmem %s3, %s267
      %s269 = smul.u32 16, %s21
      %p270 = scmp.lt.s32.totalorder %s20, 1
      %s271 = scalar_select %p270, %s20, 1
      %p272 = scmp.lt.s32.totalorder %s269, 15
      %s273 = scalar_select %p272, %s269, 15
      %p274 = scmp.lt.s32.totalorder %s22, 0
      %s275 = scalar_select %p274, %s22, 0
      %s276 = smul.addr %s273, 2
      %s277 = sadd.s32 %s275, %s276
      %s278 = smul.addr %s271, 32
      %s279 = sadd.s32 %s277, %s278
      %s280 = smul.addr %s279, 4
      %s281 = scalar_lea.vmem %s4, %s280
      %s282 = smul.u32 16, %s21
      %s284 = smul.u32 %s21, 16
      %s285 = smul.u32 %s284, 3
      %s286 = smul.addr %s285, 4
      %s287 = scalar_lea.vmem %s258, %s286
      %v288 = vld [vmem:[%s287] sm:$0xf]
      %v289 = vld [vmem:[%s287 + $0x4] sm:$0xf]
      %v290 = vld [vmem:[%s287 + $0xc] sm:$0xf]
      %v291 = vld [vmem:[%s287 + $0x10] sm:$0xf]
      %v292 = vld [vmem:[%s287 + $0x18] sm:$0xf]
      %v293 = vld [vmem:[%s287 + $0x1c] sm:$0xf]
      %v294 = vld [vmem:[%s287 + $0x24] sm:$0xf]
      %v295 = vld [vmem:[%s287 + $0x28] sm:$0xf]
      %v296 = vld [vmem:[%s287 + $0x30] sm:$0xf]
      %v297 = vld [vmem:[%s287 + $0x34] sm:$0xf]
      %v298 = vld [vmem:[%s287 + $0x3c] sm:$0xf]
      %v299 = vld [vmem:[%s287 + $0x40] sm:$0xf]
      %v300 = vld [vmem:[%s287 + $0x48] sm:$0xf]
      %v301 = vld [vmem:[%s287 + $0x4c] sm:$0xf]
      %v302 = vld [vmem:[%s287 + $0x54] sm:$0xf]
      %v303 = vld [vmem:[%s287 + $0x58] sm:$0xf]
      %v304 = vld [vmem:[%s287 + $0x60] sm:$0xf]
      %v305 = vld [vmem:[%s287 + $0x64] sm:$0xf]
      %v306 = vld [vmem:[%s287 + $0x6c] sm:$0xf]
      %v307 = vld [vmem:[%s287 + $0x70] sm:$0xf]
      %v308 = vld [vmem:[%s287 + $0x78] sm:$0xf]
      %v309 = vld [vmem:[%s287 + $0x7c] sm:$0xf]
      %v310 = vld [vmem:[%s287 + $0x84] sm:$0xf]
      %v311 = vld [vmem:[%s287 + $0x88] sm:$0xf]
      %v312 = vld [vmem:[%s287 + $0x90] sm:$0xf]
      %v313 = vld [vmem:[%s287 + $0x94] sm:$0xf]
      %v314 = vld [vmem:[%s287 + $0x9c] sm:$0xf]
      %v315 = vld [vmem:[%s287 + $0xa0] sm:$0xf]
      %v316 = vld [vmem:[%s287 + $0xa8] sm:$0xf]
      %v317 = vld [vmem:[%s287 + $0xac] sm:$0xf]
      %v318 = vld [vmem:[%s287 + $0xb4] sm:$0xf]
      %v319 = vld [vmem:[%s287 + $0xb8] sm:$0xf]
      %v320 = vld [vmem:[%s287 + $0x8] sm:$0x1]
      %v321 = vld [vmem:[%s287 + $0x14] sm:$0x1]
      %v322 = vld [vmem:[%s287 + $0x20] sm:$0x1]
      %v323 = vld [vmem:[%s287 + $0x2c] sm:$0x1]
      %v324 = vld [vmem:[%s287 + $0x38] sm:$0x1]
      %v325 = vld [vmem:[%s287 + $0x44] sm:$0x1]
      %v326 = vld [vmem:[%s287 + $0x50] sm:$0x1]
      %v327 = vld [vmem:[%s287 + $0x5c] sm:$0x1]
      %v328 = vld [vmem:[%s287 + $0x68] sm:$0x1]
      %v329 = vld [vmem:[%s287 + $0x74] sm:$0x1]
      %v330 = vld [vmem:[%s287 + $0x80] sm:$0x1]
      %v331 = vld [vmem:[%s287 + $0x8c] sm:$0x1]
      %v332 = vld [vmem:[%s287 + $0x98] sm:$0x1]
      %v333 = vld [vmem:[%s287 + $0xa4] sm:$0x1]
      %v334 = vld [vmem:[%s287 + $0xb0] sm:$0x1]
      %v335 = vld [vmem:[%s287 + $0xbc] sm:$0x1]
      %v336 = vld [vmem:[%s287] sm:$0xe]
      %v337 = vld [vmem:[%s287 + $0xc] sm:$0xe]
      %v338 = vld [vmem:[%s287 + $0x18] sm:$0xe]
      %v339 = vld [vmem:[%s287 + $0x24] sm:$0xe]
      %v340 = vld [vmem:[%s287 + $0x30] sm:$0xe]
      %v341 = vld [vmem:[%s287 + $0x3c] sm:$0xe]
      %v342 = vld [vmem:[%s287 + $0x48] sm:$0xe]
      %v343 = vld [vmem:[%s287 + $0x54] sm:$0xe]
      %v344 = vld [vmem:[%s287 + $0x60] sm:$0xe]
      %v345 = vld [vmem:[%s287 + $0x6c] sm:$0xe]
      %v346 = vld [vmem:[%s287 + $0x78] sm:$0xe]
      %v347 = vld [vmem:[%s287 + $0x84] sm:$0xe]
      %v348 = vld [vmem:[%s287 + $0x90] sm:$0xe]
      %v349 = vld [vmem:[%s287 + $0x9c] sm:$0xe]
      %v350 = vld [vmem:[%s287 + $0xa8] sm:$0xe]
      %v351 = vld [vmem:[%s287 + $0xb4] sm:$0xe]
      %s352 = sadd.s32 %s284, 1
      %s353 = smul.u32 %s352, 3
      %s354 = smul.addr %s353, 4
      %s355 = scalar_lea.vmem %s258, %s354
      %v356 = vld [vmem:[%s355] sm:$0xf]
      %v357 = vld [vmem:[%s355 + $0x4] sm:$0xf]
      %v358 = vld [vmem:[%s355 + $0xc] sm:$0xf]
      %v359 = vld [vmem:[%s355 + $0x10] sm:$0xf]
      %v360 = vld [vmem:[%s355 + $0x18] sm:$0xf]
      %v361 = vld [vmem:[%s355 + $0x1c] sm:$0xf]
      %v362 = vld [vmem:[%s355 + $0x24] sm:$0xf]
      %v363 = vld [vmem:[%s355 + $0x28] sm:$0xf]
      %v364 = vld [vmem:[%s355 + $0x30] sm:$0xf]
      %v365 = vld [vmem:[%s355 + $0x34] sm:$0xf]
      %v366 = vld [vmem:[%s355 + $0x3c] sm:$0xf]
      %v367 = vld [vmem:[%s355 + $0x40] sm:$0xf]
      %v368 = vld [vmem:[%s355 + $0x48] sm:$0xf]
      %v369 = vld [vmem:[%s355 + $0x4c] sm:$0xf]
      %v370 = vld [vmem:[%s355 + $0x54] sm:$0xf]
      %v371 = vld [vmem:[%s355 + $0x58] sm:$0xf]
      %v372 = vld [vmem:[%s355 + $0x60] sm:$0xf]
      %v373 = vld [vmem:[%s355 + $0x64] sm:$0xf]
      %v374 = vld [vmem:[%s355 + $0x6c] sm:$0xf]
      %v375 = vld [vmem:[%s355 + $0x70] sm:$0xf]
      %v376 = vld [vmem:[%s355 + $0x78] sm:$0xf]
      %v377 = vld [vmem:[%s355 + $0x7c] sm:$0xf]
      %v378 = vld [vmem:[%s355 + $0x84] sm:$0xf]
      %v379 = vld [vmem:[%s355 + $0x88] sm:$0xf]
      %v380 = vld [vmem:[%s355 + $0x90] sm:$0xf]
      %v381 = vld [vmem:[%s355 + $0x94] sm:$0xf]
      %v382 = vld [vmem:[%s355 + $0x9c] sm:$0xf]
      %v383 = vld [vmem:[%s355 + $0xa0] sm:$0xf]
      %v384 = vld [vmem:[%s355 + $0xa8] sm:$0xf]
      %v385 = vld [vmem:[%s355 + $0xac] sm:$0xf]
      %v386 = vld [vmem:[%s355 + $0xb4] sm:$0xf]
      %v387 = vld [vmem:[%s355 + $0xb8] sm:$0xf]
      %v388 = vld [vmem:[%s355 + $0x8] sm:$0x1]
      %v389 = vld [vmem:[%s355 + $0x14] sm:$0x1]
      %v390 = vld [vmem:[%s355 + $0x20] sm:$0x1]
      %v391 = vld [vmem:[%s355 + $0x2c] sm:$0x1]
      %v392 = vld [vmem:[%s355 + $0x38] sm:$0x1]
      %v393 = vld [vmem:[%s355 + $0x44] sm:$0x1]
      %v394 = vld [vmem:[%s355 + $0x50] sm:$0x1]
      %v395 = vld [vmem:[%s355 + $0x5c] sm:$0x1]
      %v396 = vld [vmem:[%s355 + $0x68] sm:$0x1]
      %v397 = vld [vmem:[%s355 + $0x74] sm:$0x1]
      %v398 = vld [vmem:[%s355 + $0x80] sm:$0x1]
      %v399 = vld [vmem:[%s355 + $0x8c] sm:$0x1]
      %v400 = vld [vmem:[%s355 + $0x98] sm:$0x1]
      %v401 = vld [vmem:[%s355 + $0xa4] sm:$0x1]
      %v402 = vld [vmem:[%s355 + $0xb0] sm:$0x1]
      %v403 = vld [vmem:[%s355 + $0xbc] sm:$0x1]
      %v404 = vld [vmem:[%s355] sm:$0xe]
      %v405 = vld [vmem:[%s355 + $0xc] sm:$0xe]
      %v406 = vld [vmem:[%s355 + $0x18] sm:$0xe]
      %v407 = vld [vmem:[%s355 + $0x24] sm:$0xe]
      %v408 = vld [vmem:[%s355 + $0x30] sm:$0xe]
      %v409 = vld [vmem:[%s355 + $0x3c] sm:$0xe]
      %v410 = vld [vmem:[%s355 + $0x48] sm:$0xe]
      %v411 = vld [vmem:[%s355 + $0x54] sm:$0xe]
      %v412 = vld [vmem:[%s355 + $0x60] sm:$0xe]
      %v413 = vld [vmem:[%s355 + $0x6c] sm:$0xe]
      %v414 = vld [vmem:[%s355 + $0x78] sm:$0xe]
      %v415 = vld [vmem:[%s355 + $0x84] sm:$0xe]
      %v416 = vld [vmem:[%s355 + $0x90] sm:$0xe]
      %v417 = vld [vmem:[%s355 + $0x9c] sm:$0xe]
      %v418 = vld [vmem:[%s355 + $0xa8] sm:$0xe]
      %v419 = vld [vmem:[%s355 + $0xb4] sm:$0xe]
      %s420 = sadd.s32 %s284, 2
      %s421 = smul.u32 %s420, 3
      %s422 = smul.addr %s421, 4
      %s423 = scalar_lea.vmem %s258, %s422
      %v424 = vld [vmem:[%s423] sm:$0xf]
      %v425 = vld [vmem:[%s423 + $0x4] sm:$0xf]
      %v426 = vld [vmem:[%s423 + $0xc] sm:$0xf]
      %v427 = vld [vmem:[%s423 + $0x10] sm:$0xf]
      %v428 = vld [vmem:[%s423 + $0x18] sm:$0xf]
      %v429 = vld [vmem:[%s423 + $0x1c] sm:$0xf]
      %v430 = vld [vmem:[%s423 + $0x24] sm:$0xf]
      %v431 = vld [vmem:[%s423 + $0x28] sm:$0xf]
      %v432 = vld [vmem:[%s423 + $0x30] sm:$0xf]
      %v433 = vld [vmem:[%s423 + $0x34] sm:$0xf]
      %v434 = vld [vmem:[%s423 + $0x3c] sm:$0xf]
      %v435 = vld [vmem:[%s423 + $0x40] sm:$0xf]
      %v436 = vld [vmem:[%s423 + $0x48] sm:$0xf]
      %v437 = vld [vmem:[%s423 + $0x4c] sm:$0xf]
      %v438 = vld [vmem:[%s423 + $0x54] sm:$0xf]
      %v439 = vld [vmem:[%s423 + $0x58] sm:$0xf]
      %v440 = vld [vmem:[%s423 + $0x60] sm:$0xf]
      %v441 = vld [vmem:[%s423 + $0x64] sm:$0xf]
      %v442 = vld [vmem:[%s423 + $0x6c] sm:$0xf]
      %v443 = vld [vmem:[%s423 + $0x70] sm:$0xf]
      %v444 = vld [vmem:[%s423 + $0x78] sm:$0xf]
      %v445 = vld [vmem:[%s423 + $0x7c] sm:$0xf]
      %v446 = vld [vmem:[%s423 + $0x84] sm:$0xf]
      %v447 = vld [vmem:[%s423 + $0x88] sm:$0xf]
      %v448 = vld [vmem:[%s423 + $0x90] sm:$0xf]
      %v449 = vld [vmem:[%s423 + $0x94] sm:$0xf]
      %v450 = vld [vmem:[%s423 + $0x9c] sm:$0xf]
      %v451 = vld [vmem:[%s423 + $0xa0] sm:$0xf]
      %v452 = vld [vmem:[%s423 + $0xa8] sm:$0xf]
      %v453 = vld [vmem:[%s423 + $0xac] sm:$0xf]
      %v454 = vld [vmem:[%s423 + $0xb4] sm:$0xf]
      %v455 = vld [vmem:[%s423 + $0xb8] sm:$0xf]
      %v456 = vld [vmem:[%s423 + $0x8] sm:$0x1]
      %v457 = vld [vmem:[%s423 + $0x14] sm:$0x1]
      %v458 = vld [vmem:[%s423 + $0x20] sm:$0x1]
      %v459 = vld [vmem:[%s423 + $0x2c] sm:$0x1]
      %v460 = vld [vmem:[%s423 + $0x38] sm:$0x1]
      %v461 = vld [vmem:[%s423 + $0x44] sm:$0x1]
      %v462 = vld [vmem:[%s423 + $0x50] sm:$0x1]
      %v463 = vld [vmem:[%s423 + $0x5c] sm:$0x1]
      %v464 = vld [vmem:[%s423 + $0x68] sm:$0x1]
      %v465 = vld [vmem:[%s423 + $0x74] sm:$0x1]
      %v466 = vld [vmem:[%s423 + $0x80] sm:$0x1]
      %v467 = vld [vmem:[%s423 + $0x8c] sm:$0x1]
      %v468 = vld [vmem:[%s423 + $0x98] sm:$0x1]
      %v469 = vld [vmem:[%s423 + $0xa4] sm:$0x1]
      %v470 = vld [vmem:[%s423 + $0xb0] sm:$0x1]
      %v471 = vld [vmem:[%s423 + $0xbc] sm:$0x1]
      %v472 = vld [vmem:[%s423] sm:$0xe]
      %v473 = vld [vmem:[%s423 + $0xc] sm:$0xe]
      %v474 = vld [vmem:[%s423 + $0x18] sm:$0xe]
      %v475 = vld [vmem:[%s423 + $0x24] sm:$0xe]
      %v476 = vld [vmem:[%s423 + $0x30] sm:$0xe]
      %v477 = vld [vmem:[%s423 + $0x3c] sm:$0xe]
      %v478 = vld [vmem:[%s423 + $0x48] sm:$0xe]
      %v479 = vld [vmem:[%s423 + $0x54] sm:$0xe]
      %v480 = vld [vmem:[%s423 + $0x60] sm:$0xe]
      %v481 = vld [vmem:[%s423 + $0x6c] sm:$0xe]
      %v482 = vld [vmem:[%s423 + $0x78] sm:$0xe]
      %v483 = vld [vmem:[%s423 + $0x84] sm:$0xe]
      %v484 = vld [vmem:[%s423 + $0x90] sm:$0xe]
      %v485 = vld [vmem:[%s423 + $0x9c] sm:$0xe]
      %v486 = vld [vmem:[%s423 + $0xa8] sm:$0xe]
      %v487 = vld [vmem:[%s423 + $0xb4] sm:$0xe]
      %v520 = vunpack.c.l.b16 %v288
      %v521 = vunpack.c.l.b16 %v289
      %v522 = vunpack.c.l.b16 %v290
      %v523 = vunpack.c.l.b16 %v291
      %v524 = vunpack.c.l.b16 %v292
      %v525 = vunpack.c.l.b16 %v293
      %v526 = vunpack.c.l.b16 %v294
      %v527 = vunpack.c.l.b16 %v295
      %v528 = vunpack.c.l.b16 %v296
      %v529 = vunpack.c.l.b16 %v297
      %v530 = vunpack.c.l.b16 %v298
      %v531 = vunpack.c.l.b16 %v299
      %v532 = vunpack.c.l.b16 %v300
      %v533 = vunpack.c.l.b16 %v301
      %v534 = vunpack.c.l.b16 %v302
      %v535 = vunpack.c.l.b16 %v303
      %v536 = vunpack.c.l.b16 %v304
      %v537 = vunpack.c.l.b16 %v305
      %v538 = vunpack.c.l.b16 %v306
      %v539 = vunpack.c.l.b16 %v307
      %v540 = vunpack.c.l.b16 %v308
      %v541 = vunpack.c.l.b16 %v309
      %v542 = vunpack.c.l.b16 %v310
      %v543 = vunpack.c.l.b16 %v311
      %v544 = vunpack.c.l.b16 %v312
      %v545 = vunpack.c.l.b16 %v313
      %v546 = vunpack.c.l.b16 %v314
      %v547 = vunpack.c.l.b16 %v315
      %v548 = vunpack.c.l.b16 %v316
      %v549 = vunpack.c.l.b16 %v317
      %v550 = vunpack.c.l.b16 %v318
      %v551 = vunpack.c.l.b16 %v319
      %v552 = vpack.c.b16 %v521, %v520
      %v553 = vpack.c.b16 %v523, %v522
      %v554 = vpack.c.b16 %v525, %v524
      %v555 = vpack.c.b16 %v527, %v526
      %v556 = vpack.c.b16 %v529, %v528
      %v557 = vpack.c.b16 %v531, %v530
      %v558 = vpack.c.b16 %v533, %v532
      %v559 = vpack.c.b16 %v535, %v534
      %v560 = vpack.c.b16 %v537, %v536
      %v561 = vpack.c.b16 %v539, %v538
      %v562 = vpack.c.b16 %v541, %v540
      %v563 = vpack.c.b16 %v543, %v542
      %v564 = vpack.c.b16 %v545, %v544
      %v565 = vpack.c.b16 %v547, %v546
      %v566 = vpack.c.b16 %v549, %v548
      %v567 = vpack.c.b16 %v551, %v550
      %v584 = vunpack.c.l.b16 %v320
      %v585 = vunpack.c.l.b16 %v321
      %v586 = vunpack.c.l.b16 %v322
      %v587 = vunpack.c.l.b16 %v323
      %v588 = vunpack.c.l.b16 %v324
      %v589 = vunpack.c.l.b16 %v325
      %v590 = vunpack.c.l.b16 %v326
      %v591 = vunpack.c.l.b16 %v327
      %v592 = vunpack.c.l.b16 %v328
      %v593 = vunpack.c.l.b16 %v329
      %v594 = vunpack.c.l.b16 %v330
      %v595 = vunpack.c.l.b16 %v331
      %v596 = vunpack.c.l.b16 %v332
      %v597 = vunpack.c.l.b16 %v333
      %v598 = vunpack.c.l.b16 %v334
      %v599 = vunpack.c.l.b16 %v335
      %v600 = vpack.c.b16 %v584, %v584
      %v601 = vpack.c.b16 %v585, %v585
      %v602 = vpack.c.b16 %v586, %v586
      %v603 = vpack.c.b16 %v587, %v587
      %v604 = vpack.c.b16 %v588, %v588
      %v605 = vpack.c.b16 %v589, %v589
      %v606 = vpack.c.b16 %v590, %v590
      %v607 = vpack.c.b16 %v591, %v591
      %v608 = vpack.c.b16 %v592, %v592
      %v609 = vpack.c.b16 %v593, %v593
      %v610 = vpack.c.b16 %v594, %v594
      %v611 = vpack.c.b16 %v595, %v595
      %v612 = vpack.c.b16 %v596, %v596
      %v613 = vpack.c.b16 %v597, %v597
      %v614 = vpack.c.b16 %v598, %v598
      %v615 = vpack.c.b16 %v599, %v599
      %vm616 = vsmask.f32 7424
      %v618 = vshrl.u32 %v552, 16
      %v620 = vshll.u32 %v552, 16
      %v622 = vrot.slane %v620, 1
      %v623 = vor.u32 %v618, %v622
      %v625 = vshll.u32 %v600, 16
      %v627 = vrot.slane %v625, 1
      %v628 = vsel %vm616, %v623, %v627
      %v630 = vshrl.u32 %v553, 16
      %v632 = vshll.u32 %v553, 16
      %v634 = vrot.slane %v632, 1
      %v635 = vor.u32 %v630, %v634
      %v637 = vshll.u32 %v601, 16
      %v639 = vrot.slane %v637, 1
      %v640 = vsel %vm616, %v635, %v639
      %v642 = vshrl.u32 %v554, 16
      %v644 = vshll.u32 %v554, 16
      %v646 = vrot.slane %v644, 1
      %v647 = vor.u32 %v642, %v646
      %v649 = vshll.u32 %v602, 16
      %v651 = vrot.slane %v649, 1
      %v652 = vsel %vm616, %v647, %v651
      %v654 = vshrl.u32 %v555, 16
      %v656 = vshll.u32 %v555, 16
      %v658 = vrot.slane %v656, 1
      %v659 = vor.u32 %v654, %v658
      %v661 = vshll.u32 %v603, 16
      %v663 = vrot.slane %v661, 1
      %v664 = vsel %vm616, %v659, %v663
      %v666 = vshrl.u32 %v556, 16
      %v668 = vshll.u32 %v556, 16
      %v670 = vrot.slane %v668, 1
      %v671 = vor.u32 %v666, %v670
      %v673 = vshll.u32 %v604, 16
      %v675 = vrot.slane %v673, 1
      %v676 = vsel %vm616, %v671, %v675
      %v678 = vshrl.u32 %v557, 16
      %v680 = vshll.u32 %v557, 16
      %v682 = vrot.slane %v680, 1
      %v683 = vor.u32 %v678, %v682
      %v685 = vshll.u32 %v605, 16
      %v687 = vrot.slane %v685, 1
      %v688 = vsel %vm616, %v683, %v687
      %v690 = vshrl.u32 %v558, 16
      %v692 = vshll.u32 %v558, 16
      %v694 = vrot.slane %v692, 1
      %v695 = vor.u32 %v690, %v694
      %v697 = vshll.u32 %v606, 16
      %v699 = vrot.slane %v697, 1
      %v700 = vsel %vm616, %v695, %v699
      %v702 = vshrl.u32 %v559, 16
      %v704 = vshll.u32 %v559, 16
      %v706 = vrot.slane %v704, 1
      %v707 = vor.u32 %v702, %v706
      %v709 = vshll.u32 %v607, 16
      %v711 = vrot.slane %v709, 1
      %v712 = vsel %vm616, %v707, %v711
      %v714 = vshrl.u32 %v560, 16
      %v716 = vshll.u32 %v560, 16
      %v718 = vrot.slane %v716, 1
      %v719 = vor.u32 %v714, %v718
      %v721 = vshll.u32 %v608, 16
      %v723 = vrot.slane %v721, 1
      %v724 = vsel %vm616, %v719, %v723
      %v726 = vshrl.u32 %v561, 16
      %v728 = vshll.u32 %v561, 16
      %v730 = vrot.slane %v728, 1
      %v731 = vor.u32 %v726, %v730
      %v733 = vshll.u32 %v609, 16
      %v735 = vrot.slane %v733, 1
      %v736 = vsel %vm616, %v731, %v735
      %v738 = vshrl.u32 %v562, 16
      %v740 = vshll.u32 %v562, 16
      %v742 = vrot.slane %v740, 1
      %v743 = vor.u32 %v738, %v742
      %v745 = vshll.u32 %v610, 16
      %v747 = vrot.slane %v745, 1
      %v748 = vsel %vm616, %v743, %v747
      %v750 = vshrl.u32 %v563, 16
      %v752 = vshll.u32 %v563, 16
      %v754 = vrot.slane %v752, 1
      %v755 = vor.u32 %v750, %v754
      %v757 = vshll.u32 %v611, 16
      %v759 = vrot.slane %v757, 1
      %v760 = vsel %vm616, %v755, %v759
      %v762 = vshrl.u32 %v564, 16
      %v764 = vshll.u32 %v564, 16
      %v766 = vrot.slane %v764, 1
      %v767 = vor.u32 %v762, %v766
      %v769 = vshll.u32 %v612, 16
      %v771 = vrot.slane %v769, 1
      %v772 = vsel %vm616, %v767, %v771
      %v774 = vshrl.u32 %v565, 16
      %v776 = vshll.u32 %v565, 16
      %v778 = vrot.slane %v776, 1
      %v779 = vor.u32 %v774, %v778
      %v781 = vshll.u32 %v613, 16
      %v783 = vrot.slane %v781, 1
      %v784 = vsel %vm616, %v779, %v783
      %v786 = vshrl.u32 %v566, 16
      %v788 = vshll.u32 %v566, 16
      %v790 = vrot.slane %v788, 1
      %v791 = vor.u32 %v786, %v790
      %v793 = vshll.u32 %v614, 16
      %v795 = vrot.slane %v793, 1
      %v796 = vsel %vm616, %v791, %v795
      %v798 = vshrl.u32 %v567, 16
      %v800 = vshll.u32 %v567, 16
      %v802 = vrot.slane %v800, 1
      %v803 = vor.u32 %v798, %v802
      %v805 = vshll.u32 %v615, 16
      %v807 = vrot.slane %v805, 1
      %v808 = vsel %vm616, %v803, %v807
      %809 = vrot.lane.b32.xlu0 %v628, 4
      %v810 = vpop.permute.xlu0 %809
      %811 = vrot.lane.b32.xlu0 %v640, 4
      %v812 = vpop.permute.xlu0 %811
      %813 = vrot.lane.b32.xlu0 %v652, 4
      %v814 = vpop.permute.xlu0 %813
      %815 = vrot.lane.b32.xlu0 %v664, 4
      %v816 = vpop.permute.xlu0 %815
      %817 = vrot.lane.b32.xlu0 %v676, 4
      %v818 = vpop.permute.xlu0 %817
      %819 = vrot.lane.b32.xlu0 %v688, 4
      %v820 = vpop.permute.xlu0 %819
      %821 = vrot.lane.b32.xlu0 %v700, 4
      %v822 = vpop.permute.xlu0 %821
      %823 = vrot.lane.b32.xlu0 %v712, 4
      %v824 = vpop.permute.xlu0 %823
      %825 = vrot.lane.b32.xlu0 %v724, 4
      %v826 = vpop.permute.xlu0 %825
      %827 = vrot.lane.b32.xlu0 %v736, 4
      %v828 = vpop.permute.xlu0 %827
      %829 = vrot.lane.b32.xlu0 %v748, 4
      %v830 = vpop.permute.xlu0 %829
      %831 = vrot.lane.b32.xlu0 %v760, 4
      %v832 = vpop.permute.xlu0 %831
      %833 = vrot.lane.b32.xlu0 %v772, 4
      %v834 = vpop.permute.xlu0 %833
      %835 = vrot.lane.b32.xlu0 %v784, 4
      %v836 = vpop.permute.xlu0 %835
      %837 = vrot.lane.b32.xlu0 %v796, 4
      %v838 = vpop.permute.xlu0 %837
      %839 = vrot.lane.b32.xlu0 %v808, 4
      %v840 = vpop.permute.xlu0 %839
      %v857 = vunpack.c.l.b16 %v336
      %v858 = vunpack.c.l.b16 %v337
      %v859 = vunpack.c.l.b16 %v338
      %v860 = vunpack.c.l.b16 %v339
      %v861 = vunpack.c.l.b16 %v340
      %v862 = vunpack.c.l.b16 %v341
      %v863 = vunpack.c.l.b16 %v342
      %v864 = vunpack.c.l.b16 %v343
      %v865 = vunpack.c.l.b16 %v344
      %v866 = vunpack.c.l.b16 %v345
      %v867 = vunpack.c.l.b16 %v346
      %v868 = vunpack.c.l.b16 %v347
      %v869 = vunpack.c.l.b16 %v348
      %v870 = vunpack.c.l.b16 %v349
      %v871 = vunpack.c.l.b16 %v350
      %v872 = vunpack.c.l.b16 %v351
      %v873 = vpack.c.b16 %v521, %v857
      %v874 = vpack.c.b16 %v523, %v858
      %v875 = vpack.c.b16 %v525, %v859
      %v876 = vpack.c.b16 %v527, %v860
      %v877 = vpack.c.b16 %v529, %v861
      %v878 = vpack.c.b16 %v531, %v862
      %v879 = vpack.c.b16 %v533, %v863
      %v880 = vpack.c.b16 %v535, %v864
      %v881 = vpack.c.b16 %v537, %v865
      %v882 = vpack.c.b16 %v539, %v866
      %v883 = vpack.c.b16 %v541, %v867
      %v884 = vpack.c.b16 %v543, %v868
      %v885 = vpack.c.b16 %v545, %v869
      %v886 = vpack.c.b16 %v547, %v870
      %v887 = vpack.c.b16 %v549, %v871
      %v888 = vpack.c.b16 %v551, %v872
      %vm889 = vcmask 1046528
      %v890 = vrot.slane %v873, 1
      %v891 = vrot.slane %v600, 1
      %v892 = vsel %vm889, %v890, %v891
      %v893 = vrot.slane %v874, 1
      %v894 = vrot.slane %v601, 1
      %v895 = vsel %vm889, %v893, %v894
      %v896 = vrot.slane %v875, 1
      %v897 = vrot.slane %v602, 1
      %v898 = vsel %vm889, %v896, %v897
      %v899 = vrot.slane %v876, 1
      %v900 = vrot.slane %v603, 1
      %v901 = vsel %vm889, %v899, %v900
      %v902 = vrot.slane %v877, 1
      %v903 = vrot.slane %v604, 1
      %v904 = vsel %vm889, %v902, %v903
      %v905 = vrot.slane %v878, 1
      %v906 = vrot.slane %v605, 1
      %v907 = vsel %vm889, %v905, %v906
      %v908 = vrot.slane %v879, 1
      %v909 = vrot.slane %v606, 1
      %v910 = vsel %vm889, %v908, %v909
      %v911 = vrot.slane %v880, 1
      %v912 = vrot.slane %v607, 1
      %v913 = vsel %vm889, %v911, %v912
      %v914 = vrot.slane %v881, 1
      %v915 = vrot.slane %v608, 1
      %v916 = vsel %vm889, %v914, %v915
      %v917 = vrot.slane %v882, 1
      %v918 = vrot.slane %v609, 1
      %v919 = vsel %vm889, %v917, %v918
      %v920 = vrot.slane %v883, 1
      %v921 = vrot.slane %v610, 1
      %v922 = vsel %vm889, %v920, %v921
      %v923 = vrot.slane %v884, 1
      %v924 = vrot.slane %v611, 1
      %v925 = vsel %vm889, %v923, %v924
      %v926 = vrot.slane %v885, 1
      %v927 = vrot.slane %v612, 1
      %v928 = vsel %vm889, %v926, %v927
      %v929 = vrot.slane %v886, 1
      %v930 = vrot.slane %v613, 1
      %v931 = vsel %vm889, %v929, %v930
      %v932 = vrot.slane %v887, 1
      %v933 = vrot.slane %v614, 1
      %v934 = vsel %vm889, %v932, %v933
      %v935 = vrot.slane %v888, 1
      %v936 = vrot.slane %v615, 1
      %v937 = vsel %vm889, %v935, %v936
      %938 = vrot.lane.b32.xlu0 %v892, 8
      %v939 = vpop.permute.xlu0 %938
      %940 = vrot.lane.b32.xlu0 %v895, 8
      %v941 = vpop.permute.xlu0 %940
      %942 = vrot.lane.b32.xlu0 %v898, 8
      %v943 = vpop.permute.xlu0 %942
      %944 = vrot.lane.b32.xlu0 %v901, 8
      %v945 = vpop.permute.xlu0 %944
      %946 = vrot.lane.b32.xlu0 %v904, 8
      %v947 = vpop.permute.xlu0 %946
      %948 = vrot.lane.b32.xlu0 %v907, 8
      %v949 = vpop.permute.xlu0 %948
      %950 = vrot.lane.b32.xlu0 %v910, 8
      %v951 = vpop.permute.xlu0 %950
      %952 = vrot.lane.b32.xlu0 %v913, 8
      %v953 = vpop.permute.xlu0 %952
      %954 = vrot.lane.b32.xlu0 %v916, 8
      %v955 = vpop.permute.xlu0 %954
      %956 = vrot.lane.b32.xlu0 %v919, 8
      %v957 = vpop.permute.xlu0 %956
      %958 = vrot.lane.b32.xlu0 %v922, 8
      %v959 = vpop.permute.xlu0 %958
      %960 = vrot.lane.b32.xlu0 %v925, 8
      %v961 = vpop.permute.xlu0 %960
      %962 = vrot.lane.b32.xlu0 %v928, 8
      %v963 = vpop.permute.xlu0 %962
      %964 = vrot.lane.b32.xlu0 %v931, 8
      %v965 = vpop.permute.xlu0 %964
      %966 = vrot.lane.b32.xlu0 %v934, 8
      %v967 = vpop.permute.xlu0 %966
      %968 = vrot.lane.b32.xlu0 %v937, 8
      %v969 = vpop.permute.xlu0 %968
      %v1002 = vunpack.c.l.b16 %v356
      %v1003 = vunpack.c.l.b16 %v357
      %v1004 = vunpack.c.l.b16 %v358
      %v1005 = vunpack.c.l.b16 %v359
      %v1006 = vunpack.c.l.b16 %v360
      %v1007 = vunpack.c.l.b16 %v361
      %v1008 = vunpack.c.l.b16 %v362
      %v1009 = vunpack.c.l.b16 %v363
      %v1010 = vunpack.c.l.b16 %v364
      %v1011 = vunpack.c.l.b16 %v365
      %v1012 = vunpack.c.l.b16 %v366
      %v1013 = vunpack.c.l.b16 %v367
      %v1014 = vunpack.c.l.b16 %v368
      %v1015 = vunpack.c.l.b16 %v369
      %v1016 = vunpack.c.l.b16 %v370
      %v1017 = vunpack.c.l.b16 %v371
      %v1018 = vunpack.c.l.b16 %v372
      %v1019 = vunpack.c.l.b16 %v373
      %v1020 = vunpack.c.l.b16 %v374
      %v1021 = vunpack.c.l.b16 %v375
      %v1022 = vunpack.c.l.b16 %v376
      %v1023 = vunpack.c.l.b16 %v377
      %v1024 = vunpack.c.l.b16 %v378
      %v1025 = vunpack.c.l.b16 %v379
      %v1026 = vunpack.c.l.b16 %v380
      %v1027 = vunpack.c.l.b16 %v381
      %v1028 = vunpack.c.l.b16 %v382
      %v1029 = vunpack.c.l.b16 %v383
      %v1030 = vunpack.c.l.b16 %v384
      %v1031 = vunpack.c.l.b16 %v385
      %v1032 = vunpack.c.l.b16 %v386
      %v1033 = vunpack.c.l.b16 %v387
      %v1034 = vpack.c.b16 %v1003, %v1002
      %v1035 = vpack.c.b16 %v1005, %v1004
      %v1036 = vpack.c.b16 %v1007, %v1006
      %v1037 = vpack.c.b16 %v1009, %v1008
      %v1038 = vpack.c.b16 %v1011, %v1010
      %v1039 = vpack.c.b16 %v1013, %v1012
      %v1040 = vpack.c.b16 %v1015, %v1014
      %v1041 = vpack.c.b16 %v1017, %v1016
      %v1042 = vpack.c.b16 %v1019, %v1018
      %v1043 = vpack.c.b16 %v1021, %v1020
      %v1044 = vpack.c.b16 %v1023, %v1022
      %v1045 = vpack.c.b16 %v1025, %v1024
      %v1046 = vpack.c.b16 %v1027, %v1026
      %v1047 = vpack.c.b16 %v1029, %v1028
      %v1048 = vpack.c.b16 %v1031, %v1030
      %v1049 = vpack.c.b16 %v1033, %v1032
      %1050 = vrot.lane.b32.xlu0 %v1034, 12
      %v1051 = vpop.permute.xlu0 %1050
      %1052 = vrot.lane.b32.xlu0 %v1035, 12
      %v1053 = vpop.permute.xlu0 %1052
      %1054 = vrot.lane.b32.xlu0 %v1036, 12
      %v1055 = vpop.permute.xlu0 %1054
      %1056 = vrot.lane.b32.xlu0 %v1037, 12
      %v1057 = vpop.permute.xlu0 %1056
      %1058 = vrot.lane.b32.xlu0 %v1038, 12
      %v1059 = vpop.permute.xlu0 %1058
      %1060 = vrot.lane.b32.xlu0 %v1039, 12
      %v1061 = vpop.permute.xlu0 %1060
      %1062 = vrot.lane.b32.xlu0 %v1040, 12
      %v1063 = vpop.permute.xlu0 %1062
      %1064 = vrot.lane.b32.xlu0 %v1041, 12
      %v1065 = vpop.permute.xlu0 %1064
      %1066 = vrot.lane.b32.xlu0 %v1042, 12
      %v1067 = vpop.permute.xlu0 %1066
      %1068 = vrot.lane.b32.xlu0 %v1043, 12
      %v1069 = vpop.permute.xlu0 %1068
      %1070 = vrot.lane.b32.xlu0 %v1044, 12
      %v1071 = vpop.permute.xlu0 %1070
      %1072 = vrot.lane.b32.xlu0 %v1045, 12
      %v1073 = vpop.permute.xlu0 %1072
      %1074 = vrot.lane.b32.xlu0 %v1046, 12
      %v1075 = vpop.permute.xlu0 %1074
      %1076 = vrot.lane.b32.xlu0 %v1047, 12
      %v1077 = vpop.permute.xlu0 %1076
      %1078 = vrot.lane.b32.xlu0 %v1048, 12
      %v1079 = vpop.permute.xlu0 %1078
      %1080 = vrot.lane.b32.xlu0 %v1049, 12
      %v1081 = vpop.permute.xlu0 %1080
      %v1098 = vunpack.c.l.b16 %v388
      %v1099 = vunpack.c.l.b16 %v389
      %v1100 = vunpack.c.l.b16 %v390
      %v1101 = vunpack.c.l.b16 %v391
      %v1102 = vunpack.c.l.b16 %v392
      %v1103 = vunpack.c.l.b16 %v393
      %v1104 = vunpack.c.l.b16 %v394
      %v1105 = vunpack.c.l.b16 %v395
      %v1106 = vunpack.c.l.b16 %v396
      %v1107 = vunpack.c.l.b16 %v397
      %v1108 = vunpack.c.l.b16 %v398
      %v1109 = vunpack.c.l.b16 %v399
      %v1110 = vunpack.c.l.b16 %v400
      %v1111 = vunpack.c.l.b16 %v401
      %v1112 = vunpack.c.l.b16 %v402
      %v1113 = vunpack.c.l.b16 %v403
      %v1114 = vpack.c.b16 %v1098, %v1098
      %v1115 = vpack.c.b16 %v1099, %v1099
      %v1116 = vpack.c.b16 %v1100, %v1100
      %v1117 = vpack.c.b16 %v1101, %v1101
      %v1118 = vpack.c.b16 %v1102, %v1102
      %v1119 = vpack.c.b16 %v1103, %v1103
      %v1120 = vpack.c.b16 %v1104, %v1104
      %v1121 = vpack.c.b16 %v1105, %v1105
      %v1122 = vpack.c.b16 %v1106, %v1106
      %v1123 = vpack.c.b16 %v1107, %v1107
      %v1124 = vpack.c.b16 %v1108, %v1108
      %v1125 = vpack.c.b16 %v1109, %v1109
      %v1126 = vpack.c.b16 %v1110, %v1110
      %v1127 = vpack.c.b16 %v1111, %v1111
      %v1128 = vpack.c.b16 %v1112, %v1112
      %v1129 = vpack.c.b16 %v1113, %v1113
      %v1131 = vshrl.u32 %v1034, 16
      %v1133 = vshll.u32 %v1034, 16
      %v1135 = vrot.slane %v1133, 1
      %v1136 = vor.u32 %v1131, %v1135
      %v1138 = vshll.u32 %v1114, 16
      %v1140 = vrot.slane %v1138, 1
      %v1141 = vsel %vm616, %v1136, %v1140
      %v1143 = vshrl.u32 %v1035, 16
      %v1145 = vshll.u32 %v1035, 16
      %v1147 = vrot.slane %v1145, 1
      %v1148 = vor.u32 %v1143, %v1147
      %v1150 = vshll.u32 %v1115, 16
      %v1152 = vrot.slane %v1150, 1
      %v1153 = vsel %vm616, %v1148, %v1152
      %v1155 = vshrl.u32 %v1036, 16
      %v1157 = vshll.u32 %v1036, 16
      %v1159 = vrot.slane %v1157, 1
      %v1160 = vor.u32 %v1155, %v1159
      %v1162 = vshll.u32 %v1116, 16
      %v1164 = vrot.slane %v1162, 1
      %v1165 = vsel %vm616, %v1160, %v1164
      %v1167 = vshrl.u32 %v1037, 16
      %v1169 = vshll.u32 %v1037, 16
      %v1171 = vrot.slane %v1169, 1
      %v1172 = vor.u32 %v1167, %v1171
      %v1174 = vshll.u32 %v1117, 16
      %v1176 = vrot.slane %v1174, 1
      %v1177 = vsel %vm616, %v1172, %v1176
      %v1179 = vshrl.u32 %v1038, 16
      %v1181 = vshll.u32 %v1038, 16
      %v1183 = vrot.slane %v1181, 1
      %v1184 = vor.u32 %v1179, %v1183
      %v1186 = vshll.u32 %v1118, 16
      %v1188 = vrot.slane %v1186, 1
      %v1189 = vsel %vm616, %v1184, %v1188
      %v1191 = vshrl.u32 %v1039, 16
      %v1193 = vshll.u32 %v1039, 16
      %v1195 = vrot.slane %v1193, 1
      %v1196 = vor.u32 %v1191, %v1195
      %v1198 = vshll.u32 %v1119, 16
      %v1200 = vrot.slane %v1198, 1
      %v1201 = vsel %vm616, %v1196, %v1200
      %v1203 = vshrl.u32 %v1040, 16
      %v1205 = vshll.u32 %v1040, 16
      %v1207 = vrot.slane %v1205, 1
      %v1208 = vor.u32 %v1203, %v1207
      %v1210 = vshll.u32 %v1120, 16
      %v1212 = vrot.slane %v1210, 1
      %v1213 = vsel %vm616, %v1208, %v1212
      %v1215 = vshrl.u32 %v1041, 16
      %v1217 = vshll.u32 %v1041, 16
      %v1219 = vrot.slane %v1217, 1
      %v1220 = vor.u32 %v1215, %v1219
      %v1222 = vshll.u32 %v1121, 16
      %v1224 = vrot.slane %v1222, 1
      %v1225 = vsel %vm616, %v1220, %v1224
      %v1227 = vshrl.u32 %v1042, 16
      %v1229 = vshll.u32 %v1042, 16
      %v1231 = vrot.slane %v1229, 1
      %v1232 = vor.u32 %v1227, %v1231
      %v1234 = vshll.u32 %v1122, 16
      %v1236 = vrot.slane %v1234, 1
      %v1237 = vsel %vm616, %v1232, %v1236
      %v1239 = vshrl.u32 %v1043, 16
      %v1241 = vshll.u32 %v1043, 16
      %v1243 = vrot.slane %v1241, 1
      %v1244 = vor.u32 %v1239, %v1243
      %v1246 = vshll.u32 %v1123, 16
      %v1248 = vrot.slane %v1246, 1
      %v1249 = vsel %vm616, %v1244, %v1248
      %v1251 = vshrl.u32 %v1044, 16
      %v1253 = vshll.u32 %v1044, 16
      %v1255 = vrot.slane %v1253, 1
      %v1256 = vor.u32 %v1251, %v1255
      %v1258 = vshll.u32 %v1124, 16
      %v1260 = vrot.slane %v1258, 1
      %v1261 = vsel %vm616, %v1256, %v1260
      %v1263 = vshrl.u32 %v1045, 16
      %v1265 = vshll.u32 %v1045, 16
      %v1267 = vrot.slane %v1265, 1
      %v1268 = vor.u32 %v1263, %v1267
      %v1270 = vshll.u32 %v1125, 16
      %v1272 = vrot.slane %v1270, 1
      %v1273 = vsel %vm616, %v1268, %v1272
      %v1275 = vshrl.u32 %v1046, 16
      %v1277 = vshll.u32 %v1046, 16
      %v1279 = vrot.slane %v1277, 1
      %v1280 = vor.u32 %v1275, %v1279
      %v1282 = vshll.u32 %v1126, 16
      %v1284 = vrot.slane %v1282, 1
      %v1285 = vsel %vm616, %v1280, %v1284
      %v1287 = vshrl.u32 %v1047, 16
      %v1289 = vshll.u32 %v1047, 16
      %v1291 = vrot.slane %v1289, 1
      %v1292 = vor.u32 %v1287, %v1291
      %v1294 = vshll.u32 %v1127, 16
      %v1296 = vrot.slane %v1294, 1
      %v1297 = vsel %vm616, %v1292, %v1296
      %v1299 = vshrl.u32 %v1048, 16
      %v1301 = vshll.u32 %v1048, 16
      %v1303 = vrot.slane %v1301, 1
      %v1304 = vor.u32 %v1299, %v1303
      %v1306 = vshll.u32 %v1128, 16
      %v1308 = vrot.slane %v1306, 1
      %v1309 = vsel %vm616, %v1304, %v1308
      %v1311 = vshrl.u32 %v1049, 16
      %v1313 = vshll.u32 %v1049, 16
      %v1315 = vrot.slane %v1313, 1
      %v1316 = vor.u32 %v1311, %v1315
      %v1318 = vshll.u32 %v1129, 16
      %v1320 = vrot.slane %v1318, 1
      %v1321 = vsel %vm616, %v1316, %v1320
      %1322 = vrot.lane.b32.xlu0 %v1141, 16
      %v1323 = vpop.permute.xlu0 %1322
      %1324 = vrot.lane.b32.xlu0 %v1153, 16
      %v1325 = vpop.permute.xlu0 %1324
      %1326 = vrot.lane.b32.xlu0 %v1165, 16
      %v1327 = vpop.permute.xlu0 %1326
      %1328 = vrot.lane.b32.xlu0 %v1177, 16
      %v1329 = vpop.permute.xlu0 %1328
      %1330 = vrot.lane.b32.xlu0 %v1189, 16
      %v1331 = vpop.permute.xlu0 %1330
      %1332 = vrot.lane.b32.xlu0 %v1201, 16
      %v1333 = vpop.permute.xlu0 %1332
      %1334 = vrot.lane.b32.xlu0 %v1213, 16
      %v1335 = vpop.permute.xlu0 %1334
      %1336 = vrot.lane.b32.xlu0 %v1225, 16
      %v1337 = vpop.permute.xlu0 %1336
      %1338 = vrot.lane.b32.xlu0 %v1237, 16
      %v1339 = vpop.permute.xlu0 %1338
      %1340 = vrot.lane.b32.xlu0 %v1249, 16
      %v1341 = vpop.permute.xlu0 %1340
      %1342 = vrot.lane.b32.xlu0 %v1261, 16
      %v1343 = vpop.permute.xlu0 %1342
      %1344 = vrot.lane.b32.xlu0 %v1273, 16
      %v1345 = vpop.permute.xlu0 %1344
      %1346 = vrot.lane.b32.xlu0 %v1285, 16
      %v1347 = vpop.permute.xlu0 %1346
      %1348 = vrot.lane.b32.xlu0 %v1297, 16
      %v1349 = vpop.permute.xlu0 %1348
      %1350 = vrot.lane.b32.xlu0 %v1309, 16
      %v1351 = vpop.permute.xlu0 %1350
      %1352 = vrot.lane.b32.xlu0 %v1321, 16
      %v1353 = vpop.permute.xlu0 %1352
      %v1370 = vunpack.c.l.b16 %v404
      %v1371 = vunpack.c.l.b16 %v405
      %v1372 = vunpack.c.l.b16 %v406
      %v1373 = vunpack.c.l.b16 %v407
      %v1374 = vunpack.c.l.b16 %v408
      %v1375 = vunpack.c.l.b16 %v409
      %v1376 = vunpack.c.l.b16 %v410
      %v1377 = vunpack.c.l.b16 %v411
      %v1378 = vunpack.c.l.b16 %v412
      %v1379 = vunpack.c.l.b16 %v413
      %v1380 = vunpack.c.l.b16 %v414
      %v1381 = vunpack.c.l.b16 %v415
      %v1382 = vunpack.c.l.b16 %v416
      %v1383 = vunpack.c.l.b16 %v417
      %v1384 = vunpack.c.l.b16 %v418
      %v1385 = vunpack.c.l.b16 %v419
      %v1386 = vpack.c.b16 %v1003, %v1370
      %v1387 = vpack.c.b16 %v1005, %v1371
      %v1388 = vpack.c.b16 %v1007, %v1372
      %v1389 = vpack.c.b16 %v1009, %v1373
      %v1390 = vpack.c.b16 %v1011, %v1374
      %v1391 = vpack.c.b16 %v1013, %v1375
      %v1392 = vpack.c.b16 %v1015, %v1376
      %v1393 = vpack.c.b16 %v1017, %v1377
      %v1394 = vpack.c.b16 %v1019, %v1378
      %v1395 = vpack.c.b16 %v1021, %v1379
      %v1396 = vpack.c.b16 %v1023, %v1380
      %v1397 = vpack.c.b16 %v1025, %v1381
      %v1398 = vpack.c.b16 %v1027, %v1382
      %v1399 = vpack.c.b16 %v1029, %v1383
      %v1400 = vpack.c.b16 %v1031, %v1384
      %v1401 = vpack.c.b16 %v1033, %v1385
      %v1402 = vrot.slane %v1386, 1
      %v1403 = vrot.slane %v1114, 1
      %v1404 = vsel %vm889, %v1402, %v1403
      %v1405 = vrot.slane %v1387, 1
      %v1406 = vrot.slane %v1115, 1
      %v1407 = vsel %vm889, %v1405, %v1406
      %v1408 = vrot.slane %v1388, 1
      %v1409 = vrot.slane %v1116, 1
      %v1410 = vsel %vm889, %v1408, %v1409
      %v1411 = vrot.slane %v1389, 1
      %v1412 = vrot.slane %v1117, 1
      %v1413 = vsel %vm889, %v1411, %v1412
      %v1414 = vrot.slane %v1390, 1
      %v1415 = vrot.slane %v1118, 1
      %v1416 = vsel %vm889, %v1414, %v1415
      %v1417 = vrot.slane %v1391, 1
      %v1418 = vrot.slane %v1119, 1
      %v1419 = vsel %vm889, %v1417, %v1418
      %v1420 = vrot.slane %v1392, 1
      %v1421 = vrot.slane %v1120, 1
      %v1422 = vsel %vm889, %v1420, %v1421
      %v1423 = vrot.slane %v1393, 1
      %v1424 = vrot.slane %v1121, 1
      %v1425 = vsel %vm889, %v1423, %v1424
      %v1426 = vrot.slane %v1394, 1
      %v1427 = vrot.slane %v1122, 1
      %v1428 = vsel %vm889, %v1426, %v1427
      %v1429 = vrot.slane %v1395, 1
      %v1430 = vrot.slane %v1123, 1
      %v1431 = vsel %vm889, %v1429, %v1430
      %v1432 = vrot.slane %v1396, 1
      %v1433 = vrot.slane %v1124, 1
      %v1434 = vsel %vm889, %v1432, %v1433
      %v1435 = vrot.slane %v1397, 1
      %v1436 = vrot.slane %v1125, 1
      %v1437 = vsel %vm889, %v1435, %v1436
      %v1438 = vrot.slane %v1398, 1
      %v1439 = vrot.slane %v1126, 1
      %v1440 = vsel %vm889, %v1438, %v1439
      %v1441 = vrot.slane %v1399, 1
      %v1442 = vrot.slane %v1127, 1
      %v1443 = vsel %vm889, %v1441, %v1442
      %v1444 = vrot.slane %v1400, 1
      %v1445 = vrot.slane %v1128, 1
      %v1446 = vsel %vm889, %v1444, %v1445
      %v1447 = vrot.slane %v1401, 1
      %v1448 = vrot.slane %v1129, 1
      %v1449 = vsel %vm889, %v1447, %v1448
      %1450 = vrot.lane.b32.xlu0 %v1404, 20
      %v1451 = vpop.permute.xlu0 %1450
      %1452 = vrot.lane.b32.xlu0 %v1407, 20
      %v1453 = vpop.permute.xlu0 %1452
      %1454 = vrot.lane.b32.xlu0 %v1410, 20
      %v1455 = vpop.permute.xlu0 %1454
      %1456 = vrot.lane.b32.xlu0 %v1413, 20
      %v1457 = vpop.permute.xlu0 %1456
      %1458 = vrot.lane.b32.xlu0 %v1416, 20
      %v1459 = vpop.permute.xlu0 %1458
      %1460 = vrot.lane.b32.xlu0 %v1419, 20
      %v1461 = vpop.permute.xlu0 %1460
      %1462 = vrot.lane.b32.xlu0 %v1422, 20
      %v1463 = vpop.permute.xlu0 %1462
      %1464 = vrot.lane.b32.xlu0 %v1425, 20
      %v1465 = vpop.permute.xlu0 %1464
      %1466 = vrot.lane.b32.xlu0 %v1428, 20
      %v1467 = vpop.permute.xlu0 %1466
      %1468 = vrot.lane.b32.xlu0 %v1431, 20
      %v1469 = vpop.permute.xlu0 %1468
      %1470 = vrot.lane.b32.xlu0 %v1434, 20
      %v1471 = vpop.permute.xlu0 %1470
      %1472 = vrot.lane.b32.xlu0 %v1437, 20
      %v1473 = vpop.permute.xlu0 %1472
      %1474 = vrot.lane.b32.xlu0 %v1440, 20
      %v1475 = vpop.permute.xlu0 %1474
      %1476 = vrot.lane.b32.xlu0 %v1443, 20
      %v1477 = vpop.permute.xlu0 %1476
      %1478 = vrot.lane.b32.xlu0 %v1446, 20
      %v1479 = vpop.permute.xlu0 %1478
      %1480 = vrot.lane.b32.xlu0 %v1449, 20
      %v1481 = vpop.permute.xlu0 %1480
      %v1514 = vunpack.c.l.b16 %v424
      %v1515 = vunpack.c.l.b16 %v425
      %v1516 = vunpack.c.l.b16 %v426
      %v1517 = vunpack.c.l.b16 %v427
      %v1518 = vunpack.c.l.b16 %v428
      %v1519 = vunpack.c.l.b16 %v429
      %v1520 = vunpack.c.l.b16 %v430
      %v1521 = vunpack.c.l.b16 %v431
      %v1522 = vunpack.c.l.b16 %v432
      %v1523 = vunpack.c.l.b16 %v433
      %v1524 = vunpack.c.l.b16 %v434
      %v1525 = vunpack.c.l.b16 %v435
      %v1526 = vunpack.c.l.b16 %v436
      %v1527 = vunpack.c.l.b16 %v437
      %v1528 = vunpack.c.l.b16 %v438
      %v1529 = vunpack.c.l.b16 %v439
      %v1530 = vunpack.c.l.b16 %v440
      %v1531 = vunpack.c.l.b16 %v441
      %v1532 = vunpack.c.l.b16 %v442
      %v1533 = vunpack.c.l.b16 %v443
      %v1534 = vunpack.c.l.b16 %v444
      %v1535 = vunpack.c.l.b16 %v445
      %v1536 = vunpack.c.l.b16 %v446
      %v1537 = vunpack.c.l.b16 %v447
      %v1538 = vunpack.c.l.b16 %v448
      %v1539 = vunpack.c.l.b16 %v449
      %v1540 = vunpack.c.l.b16 %v450
      %v1541 = vunpack.c.l.b16 %v451
      %v1542 = vunpack.c.l.b16 %v452
      %v1543 = vunpack.c.l.b16 %v453
      %v1544 = vunpack.c.l.b16 %v454
      %v1545 = vunpack.c.l.b16 %v455
      %v1546 = vpack.c.b16 %v1515, %v1514
      %v1547 = vpack.c.b16 %v1517, %v1516
      %v1548 = vpack.c.b16 %v1519, %v1518
      %v1549 = vpack.c.b16 %v1521, %v1520
      %v1550 = vpack.c.b16 %v1523, %v1522
      %v1551 = vpack.c.b16 %v1525, %v1524
      %v1552 = vpack.c.b16 %v1527, %v1526
      %v1553 = vpack.c.b16 %v1529, %v1528
      %v1554 = vpack.c.b16 %v1531, %v1530
      %v1555 = vpack.c.b16 %v1533, %v1532
      %v1556 = vpack.c.b16 %v1535, %v1534
      %v1557 = vpack.c.b16 %v1537, %v1536
      %v1558 = vpack.c.b16 %v1539, %v1538
      %v1559 = vpack.c.b16 %v1541, %v1540
      %v1560 = vpack.c.b16 %v1543, %v1542
      %v1561 = vpack.c.b16 %v1545, %v1544
      %1562 = vrot.lane.b32.xlu0 %v1546, 24
      %v1563 = vpop.permute.xlu0 %1562
      %1564 = vrot.lane.b32.xlu0 %v1547, 24
      %v1565 = vpop.permute.xlu0 %1564
      %1566 = vrot.lane.b32.xlu0 %v1548, 24
      %v1567 = vpop.permute.xlu0 %1566
      %1568 = vrot.lane.b32.xlu0 %v1549, 24
      %v1569 = vpop.permute.xlu0 %1568
      %1570 = vrot.lane.b32.xlu0 %v1550, 24
      %v1571 = vpop.permute.xlu0 %1570
      %1572 = vrot.lane.b32.xlu0 %v1551, 24
      %v1573 = vpop.permute.xlu0 %1572
      %1574 = vrot.lane.b32.xlu0 %v1552, 24
      %v1575 = vpop.permute.xlu0 %1574
      %1576 = vrot.lane.b32.xlu0 %v1553, 24
      %v1577 = vpop.permute.xlu0 %1576
      %1578 = vrot.lane.b32.xlu0 %v1554, 24
      %v1579 = vpop.permute.xlu0 %1578
      %1580 = vrot.lane.b32.xlu0 %v1555, 24
      %v1581 = vpop.permute.xlu0 %1580
      %1582 = vrot.lane.b32.xlu0 %v1556, 24
      %v1583 = vpop.permute.xlu0 %1582
      %1584 = vrot.lane.b32.xlu0 %v1557, 24
      %v1585 = vpop.permute.xlu0 %1584
      %1586 = vrot.lane.b32.xlu0 %v1558, 24
      %v1587 = vpop.permute.xlu0 %1586
      %1588 = vrot.lane.b32.xlu0 %v1559, 24
      %v1589 = vpop.permute.xlu0 %1588
      %1590 = vrot.lane.b32.xlu0 %v1560, 24
      %v1591 = vpop.permute.xlu0 %1590
      %1592 = vrot.lane.b32.xlu0 %v1561, 24
      %v1593 = vpop.permute.xlu0 %1592
      %v1610 = vunpack.c.l.b16 %v456
      %v1611 = vunpack.c.l.b16 %v457
      %v1612 = vunpack.c.l.b16 %v458
      %v1613 = vunpack.c.l.b16 %v459
      %v1614 = vunpack.c.l.b16 %v460
      %v1615 = vunpack.c.l.b16 %v461
      %v1616 = vunpack.c.l.b16 %v462
      %v1617 = vunpack.c.l.b16 %v463
      %v1618 = vunpack.c.l.b16 %v464
      %v1619 = vunpack.c.l.b16 %v465
      %v1620 = vunpack.c.l.b16 %v466
      %v1621 = vunpack.c.l.b16 %v467
      %v1622 = vunpack.c.l.b16 %v468
      %v1623 = vunpack.c.l.b16 %v469
      %v1624 = vunpack.c.l.b16 %v470
      %v1625 = vunpack.c.l.b16 %v471
      %v1626 = vpack.c.b16 %v1610, %v1610
      %v1627 = vpack.c.b16 %v1611, %v1611
      %v1628 = vpack.c.b16 %v1612, %v1612
      %v1629 = vpack.c.b16 %v1613, %v1613
      %v1630 = vpack.c.b16 %v1614, %v1614
      %v1631 = vpack.c.b16 %v1615, %v1615
      %v1632 = vpack.c.b16 %v1616, %v1616
      %v1633 = vpack.c.b16 %v1617, %v1617
      %v1634 = vpack.c.b16 %v1618, %v1618
      %v1635 = vpack.c.b16 %v1619, %v1619
      %v1636 = vpack.c.b16 %v1620, %v1620
      %v1637 = vpack.c.b16 %v1621, %v1621
      %v1638 = vpack.c.b16 %v1622, %v1622
      %v1639 = vpack.c.b16 %v1623, %v1623
      %v1640 = vpack.c.b16 %v1624, %v1624
      %v1641 = vpack.c.b16 %v1625, %v1625
      %v1643 = vshrl.u32 %v1546, 16
      %v1645 = vshll.u32 %v1546, 16
      %v1647 = vrot.slane %v1645, 1
      %v1648 = vor.u32 %v1643, %v1647
      %v1650 = vshll.u32 %v1626, 16
      %v1652 = vrot.slane %v1650, 1
      %v1653 = vsel %vm616, %v1648, %v1652
      %v1655 = vshrl.u32 %v1547, 16
      %v1657 = vshll.u32 %v1547, 16
      %v1659 = vrot.slane %v1657, 1
      %v1660 = vor.u32 %v1655, %v1659
      %v1662 = vshll.u32 %v1627, 16
      %v1664 = vrot.slane %v1662, 1
      %v1665 = vsel %vm616, %v1660, %v1664
      %v1667 = vshrl.u32 %v1548, 16
      %v1669 = vshll.u32 %v1548, 16
      %v1671 = vrot.slane %v1669, 1
      %v1672 = vor.u32 %v1667, %v1671
      %v1674 = vshll.u32 %v1628, 16
      %v1676 = vrot.slane %v1674, 1
      %v1677 = vsel %vm616, %v1672, %v1676
      %v1679 = vshrl.u32 %v1549, 16
      %v1681 = vshll.u32 %v1549, 16
      %v1683 = vrot.slane %v1681, 1
      %v1684 = vor.u32 %v1679, %v1683
      %v1686 = vshll.u32 %v1629, 16
      %v1688 = vrot.slane %v1686, 1
      %v1689 = vsel %vm616, %v1684, %v1688
      %v1691 = vshrl.u32 %v1550, 16
      %v1693 = vshll.u32 %v1550, 16
      %v1695 = vrot.slane %v1693, 1
      %v1696 = vor.u32 %v1691, %v1695
      %v1698 = vshll.u32 %v1630, 16
      %v1700 = vrot.slane %v1698, 1
      %v1701 = vsel %vm616, %v1696, %v1700
      %v1703 = vshrl.u32 %v1551, 16
      %v1705 = vshll.u32 %v1551, 16
      %v1707 = vrot.slane %v1705, 1
      %v1708 = vor.u32 %v1703, %v1707
      %v1710 = vshll.u32 %v1631, 16
      %v1712 = vrot.slane %v1710, 1
      %v1713 = vsel %vm616, %v1708, %v1712
      %v1715 = vshrl.u32 %v1552, 16
      %v1717 = vshll.u32 %v1552, 16
      %v1719 = vrot.slane %v1717, 1
      %v1720 = vor.u32 %v1715, %v1719
      %v1722 = vshll.u32 %v1632, 16
      %v1724 = vrot.slane %v1722, 1
      %v1725 = vsel %vm616, %v1720, %v1724
      %v1727 = vshrl.u32 %v1553, 16
      %v1729 = vshll.u32 %v1553, 16
      %v1731 = vrot.slane %v1729, 1
      %v1732 = vor.u32 %v1727, %v1731
      %v1734 = vshll.u32 %v1633, 16
      %v1736 = vrot.slane %v1734, 1
      %v1737 = vsel %vm616, %v1732, %v1736
      %v1739 = vshrl.u32 %v1554, 16
      %v1741 = vshll.u32 %v1554, 16
      %v1743 = vrot.slane %v1741, 1
      %v1744 = vor.u32 %v1739, %v1743
      %v1746 = vshll.u32 %v1634, 16
      %v1748 = vrot.slane %v1746, 1
      %v1749 = vsel %vm616, %v1744, %v1748
      %v1751 = vshrl.u32 %v1555, 16
      %v1753 = vshll.u32 %v1555, 16
      %v1755 = vrot.slane %v1753, 1
      %v1756 = vor.u32 %v1751, %v1755
      %v1758 = vshll.u32 %v1635, 16
      %v1760 = vrot.slane %v1758, 1
      %v1761 = vsel %vm616, %v1756, %v1760
      %v1763 = vshrl.u32 %v1556, 16
      %v1765 = vshll.u32 %v1556, 16
      %v1767 = vrot.slane %v1765, 1
      %v1768 = vor.u32 %v1763, %v1767
      %v1770 = vshll.u32 %v1636, 16
      %v1772 = vrot.slane %v1770, 1
      %v1773 = vsel %vm616, %v1768, %v1772
      %v1775 = vshrl.u32 %v1557, 16
      %v1777 = vshll.u32 %v1557, 16
      %v1779 = vrot.slane %v1777, 1
      %v1780 = vor.u32 %v1775, %v1779
      %v1782 = vshll.u32 %v1637, 16
      %v1784 = vrot.slane %v1782, 1
      %v1785 = vsel %vm616, %v1780, %v1784
      %v1787 = vshrl.u32 %v1558, 16
      %v1789 = vshll.u32 %v1558, 16
      %v1791 = vrot.slane %v1789, 1
      %v1792 = vor.u32 %v1787, %v1791
      %v1794 = vshll.u32 %v1638, 16
      %v1796 = vrot.slane %v1794, 1
      %v1797 = vsel %vm616, %v1792, %v1796
      %v1799 = vshrl.u32 %v1559, 16
      %v1801 = vshll.u32 %v1559, 16
      %v1803 = vrot.slane %v1801, 1
      %v1804 = vor.u32 %v1799, %v1803
      %v1806 = vshll.u32 %v1639, 16
      %v1808 = vrot.slane %v1806, 1
      %v1809 = vsel %vm616, %v1804, %v1808
      %v1811 = vshrl.u32 %v1560, 16
      %v1813 = vshll.u32 %v1560, 16
      %v1815 = vrot.slane %v1813, 1
      %v1816 = vor.u32 %v1811, %v1815
      %v1818 = vshll.u32 %v1640, 16
      %v1820 = vrot.slane %v1818, 1
      %v1821 = vsel %vm616, %v1816, %v1820
      %v1823 = vshrl.u32 %v1561, 16
      %v1825 = vshll.u32 %v1561, 16
      %v1827 = vrot.slane %v1825, 1
      %v1828 = vor.u32 %v1823, %v1827
      %v1830 = vshll.u32 %v1641, 16
      %v1832 = vrot.slane %v1830, 1
      %v1833 = vsel %vm616, %v1828, %v1832
      %1834 = vrot.lane.b32.xlu0 %v1653, 28
      %v1835 = vpop.permute.xlu0 %1834
      %1836 = vrot.lane.b32.xlu0 %v1665, 28
      %v1837 = vpop.permute.xlu0 %1836
      %1838 = vrot.lane.b32.xlu0 %v1677, 28
      %v1839 = vpop.permute.xlu0 %1838
      %1840 = vrot.lane.b32.xlu0 %v1689, 28
      %v1841 = vpop.permute.xlu0 %1840
      %1842 = vrot.lane.b32.xlu0 %v1701, 28
      %v1843 = vpop.permute.xlu0 %1842
      %1844 = vrot.lane.b32.xlu0 %v1713, 28
      %v1845 = vpop.permute.xlu0 %1844
      %1846 = vrot.lane.b32.xlu0 %v1725, 28
      %v1847 = vpop.permute.xlu0 %1846
      %1848 = vrot.lane.b32.xlu0 %v1737, 28
      %v1849 = vpop.permute.xlu0 %1848
      %1850 = vrot.lane.b32.xlu0 %v1749, 28
      %v1851 = vpop.permute.xlu0 %1850
      %1852 = vrot.lane.b32.xlu0 %v1761, 28
      %v1853 = vpop.permute.xlu0 %1852
      %1854 = vrot.lane.b32.xlu0 %v1773, 28
      %v1855 = vpop.permute.xlu0 %1854
      %1856 = vrot.lane.b32.xlu0 %v1785, 28
      %v1857 = vpop.permute.xlu0 %1856
      %1858 = vrot.lane.b32.xlu0 %v1797, 28
      %v1859 = vpop.permute.xlu0 %1858
      %1860 = vrot.lane.b32.xlu0 %v1809, 28
      %v1861 = vpop.permute.xlu0 %1860
      %1862 = vrot.lane.b32.xlu0 %v1821, 28
      %v1863 = vpop.permute.xlu0 %1862
      %1864 = vrot.lane.b32.xlu0 %v1833, 28
      %v1865 = vpop.permute.xlu0 %1864
      %v1882 = vunpack.c.l.b16 %v472
      %v1883 = vunpack.c.l.b16 %v473
      %v1884 = vunpack.c.l.b16 %v474
      %v1885 = vunpack.c.l.b16 %v475
      %v1886 = vunpack.c.l.b16 %v476
      %v1887 = vunpack.c.l.b16 %v477
      %v1888 = vunpack.c.l.b16 %v478
      %v1889 = vunpack.c.l.b16 %v479
      %v1890 = vunpack.c.l.b16 %v480
      %v1891 = vunpack.c.l.b16 %v481
      %v1892 = vunpack.c.l.b16 %v482
      %v1893 = vunpack.c.l.b16 %v483
      %v1894 = vunpack.c.l.b16 %v484
      %v1895 = vunpack.c.l.b16 %v485
      %v1896 = vunpack.c.l.b16 %v486
      %v1897 = vunpack.c.l.b16 %v487
      %v1898 = vpack.c.b16 %v1515, %v1882
      %v1899 = vpack.c.b16 %v1517, %v1883
      %v1900 = vpack.c.b16 %v1519, %v1884
      %v1901 = vpack.c.b16 %v1521, %v1885
      %v1902 = vpack.c.b16 %v1523, %v1886
      %v1903 = vpack.c.b16 %v1525, %v1887
      %v1904 = vpack.c.b16 %v1527, %v1888
      %v1905 = vpack.c.b16 %v1529, %v1889
      %v1906 = vpack.c.b16 %v1531, %v1890
      %v1907 = vpack.c.b16 %v1533, %v1891
      %v1908 = vpack.c.b16 %v1535, %v1892
      %v1909 = vpack.c.b16 %v1537, %v1893
      %v1910 = vpack.c.b16 %v1539, %v1894
      %v1911 = vpack.c.b16 %v1541, %v1895
      %v1912 = vpack.c.b16 %v1543, %v1896
      %v1913 = vpack.c.b16 %v1545, %v1897
      %v1914 = vrot.slane %v1898, 1
      %v1915 = vrot.slane %v1626, 1
      %v1916 = vsel %vm889, %v1914, %v1915
      %v1917 = vrot.slane %v1899, 1
      %v1918 = vrot.slane %v1627, 1
      %v1919 = vsel %vm889, %v1917, %v1918
      %v1920 = vrot.slane %v1900, 1
      %v1921 = vrot.slane %v1628, 1
      %v1922 = vsel %vm889, %v1920, %v1921
      %v1923 = vrot.slane %v1901, 1
      %v1924 = vrot.slane %v1629, 1
      %v1925 = vsel %vm889, %v1923, %v1924
      %v1926 = vrot.slane %v1902, 1
      %v1927 = vrot.slane %v1630, 1
      %v1928 = vsel %vm889, %v1926, %v1927
      %v1929 = vrot.slane %v1903, 1
      %v1930 = vrot.slane %v1631, 1
      %v1931 = vsel %vm889, %v1929, %v1930
      %v1932 = vrot.slane %v1904, 1
      %v1933 = vrot.slane %v1632, 1
      %v1934 = vsel %vm889, %v1932, %v1933
      %v1935 = vrot.slane %v1905, 1
      %v1936 = vrot.slane %v1633, 1
      %v1937 = vsel %vm889, %v1935, %v1936
      %v1938 = vrot.slane %v1906, 1
      %v1939 = vrot.slane %v1634, 1
      %v1940 = vsel %vm889, %v1938, %v1939
      %v1941 = vrot.slane %v1907, 1
      %v1942 = vrot.slane %v1635, 1
      %v1943 = vsel %vm889, %v1941, %v1942
      %v1944 = vrot.slane %v1908, 1
      %v1945 = vrot.slane %v1636, 1
      %v1946 = vsel %vm889, %v1944, %v1945
      %v1947 = vrot.slane %v1909, 1
      %v1948 = vrot.slane %v1637, 1
      %v1949 = vsel %vm889, %v1947, %v1948
      %v1950 = vrot.slane %v1910, 1
      %v1951 = vrot.slane %v1638, 1
      %v1952 = vsel %vm889, %v1950, %v1951
      %v1953 = vrot.slane %v1911, 1
      %v1954 = vrot.slane %v1639, 1
      %v1955 = vsel %vm889, %v1953, %v1954
      %v1956 = vrot.slane %v1912, 1
      %v1957 = vrot.slane %v1640, 1
      %v1958 = vsel %vm889, %v1956, %v1957
      %v1959 = vrot.slane %v1913, 1
      %v1960 = vrot.slane %v1641, 1
      %v1961 = vsel %vm889, %v1959, %v1960
      %1962 = vrot.lane.b32.xlu0 %v1916, 32
      %v1963 = vpop.permute.xlu0 %1962
      %1964 = vrot.lane.b32.xlu0 %v1919, 32
      %v1965 = vpop.permute.xlu0 %1964
      %1966 = vrot.lane.b32.xlu0 %v1922, 32
      %v1967 = vpop.permute.xlu0 %1966
      %1968 = vrot.lane.b32.xlu0 %v1925, 32
      %v1969 = vpop.permute.xlu0 %1968
      %1970 = vrot.lane.b32.xlu0 %v1928, 32
      %v1971 = vpop.permute.xlu0 %1970
      %1972 = vrot.lane.b32.xlu0 %v1931, 32
      %v1973 = vpop.permute.xlu0 %1972
      %1974 = vrot.lane.b32.xlu0 %v1934, 32
      %v1975 = vpop.permute.xlu0 %1974
      %1976 = vrot.lane.b32.xlu0 %v1937, 32
      %v1977 = vpop.permute.xlu0 %1976
      %1978 = vrot.lane.b32.xlu0 %v1940, 32
      %v1979 = vpop.permute.xlu0 %1978
      %1980 = vrot.lane.b32.xlu0 %v1943, 32
      %v1981 = vpop.permute.xlu0 %1980
      %1982 = vrot.lane.b32.xlu0 %v1946, 32
      %v1983 = vpop.permute.xlu0 %1982
      %1984 = vrot.lane.b32.xlu0 %v1949, 32
      %v1985 = vpop.permute.xlu0 %1984
      %1986 = vrot.lane.b32.xlu0 %v1952, 32
      %v1987 = vpop.permute.xlu0 %1986
      %1988 = vrot.lane.b32.xlu0 %v1955, 32
      %v1989 = vpop.permute.xlu0 %1988
      %1990 = vrot.lane.b32.xlu0 %v1958, 32
      %v1991 = vpop.permute.xlu0 %1990
      %1992 = vrot.lane.b32.xlu0 %v1961, 32
      %v1993 = vpop.permute.xlu0 %1992
      %vm1994 = vcmask 31744
      %v1996 = vsel %vm1994, %v552, %v810
      %v1998 = vsel %vm1994, %v553, %v812
      %v2000 = vsel %vm1994, %v554, %v814
      %v2002 = vsel %vm1994, %v555, %v816
      %v2004 = vsel %vm1994, %v556, %v818
      %v2006 = vsel %vm1994, %v557, %v820
      %v2008 = vsel %vm1994, %v558, %v822
      %v2010 = vsel %vm1994, %v559, %v824
      %v2012 = vsel %vm1994, %v560, %v826
      %v2014 = vsel %vm1994, %v561, %v828
      %v2016 = vsel %vm1994, %v562, %v830
      %v2018 = vsel %vm1994, %v563, %v832
      %v2020 = vsel %vm1994, %v564, %v834
      %v2022 = vsel %vm1994, %v565, %v836
      %v2024 = vsel %vm1994, %v566, %v838
      %v2026 = vsel %vm1994, %v567, %v840
      %vm2027 = vcmask 64512
      %v2029 = vsel %vm2027, %v1996, %v939
      %v2031 = vsel %vm2027, %v1998, %v941
      %v2033 = vsel %vm2027, %v2000, %v943
      %v2035 = vsel %vm2027, %v2002, %v945
      %v2037 = vsel %vm2027, %v2004, %v947
      %v2039 = vsel %vm2027, %v2006, %v949
      %v2041 = vsel %vm2027, %v2008, %v951
      %v2043 = vsel %vm2027, %v2010, %v953
      %v2045 = vsel %vm2027, %v2012, %v955
      %v2047 = vsel %vm2027, %v2014, %v957
      %v2049 = vsel %vm2027, %v2016, %v959
      %v2051 = vsel %vm2027, %v2018, %v961
      %v2053 = vsel %vm2027, %v2020, %v963
      %v2055 = vsel %vm2027, %v2022, %v965
      %v2057 = vsel %vm2027, %v2024, %v967
      %v2059 = vsel %vm2027, %v2026, %v969
      %vm2060 = vcmask 97280
      %v2062 = vsel %vm2060, %v2029, %v1051
      %v2064 = vsel %vm2060, %v2031, %v1053
      %v2066 = vsel %vm2060, %v2033, %v1055
      %v2068 = vsel %vm2060, %v2035, %v1057
      %v2070 = vsel %vm2060, %v2037, %v1059
      %v2072 = vsel %vm2060, %v2039, %v1061
      %v2074 = vsel %vm2060, %v2041, %v1063
      %v2076 = vsel %vm2060, %v2043, %v1065
      %v2078 = vsel %vm2060, %v2045, %v1067
      %v2080 = vsel %vm2060, %v2047, %v1069
      %v2082 = vsel %vm2060, %v2049, %v1071
      %v2084 = vsel %vm2060, %v2051, %v1073
      %v2086 = vsel %vm2060, %v2053, %v1075
      %v2088 = vsel %vm2060, %v2055, %v1077
      %v2090 = vsel %vm2060, %v2057, %v1079
      %v2092 = vsel %vm2060, %v2059, %v1081
      %vm2093 = vcmask 130048
      %v2095 = vsel %vm2093, %v2062, %v1323
      %v2097 = vsel %vm2093, %v2064, %v1325
      %v2099 = vsel %vm2093, %v2066, %v1327
      %v2101 = vsel %vm2093, %v2068, %v1329
      %v2103 = vsel %vm2093, %v2070, %v1331
      %v2105 = vsel %vm2093, %v2072, %v1333
      %v2107 = vsel %vm2093, %v2074, %v1335
      %v2109 = vsel %vm2093, %v2076, %v1337
      %v2111 = vsel %vm2093, %v2078, %v1339
      %v2113 = vsel %vm2093, %v2080, %v1341
      %v2115 = vsel %vm2093, %v2082, %v1343
      %v2117 = vsel %vm2093, %v2084, %v1345
      %v2119 = vsel %vm2093, %v2086, %v1347
      %v2121 = vsel %vm2093, %v2088, %v1349
      %v2123 = vsel %vm2093, %v2090, %v1351
      %v2125 = vsel %vm2093, %v2092, %v1353
      %vm2126 = vcmask 162816
      %v2128 = vsel %vm2126, %v2095, %v1451
      %v2130 = vsel %vm2126, %v2097, %v1453
      %v2132 = vsel %vm2126, %v2099, %v1455
      %v2134 = vsel %vm2126, %v2101, %v1457
      %v2136 = vsel %vm2126, %v2103, %v1459
      %v2138 = vsel %vm2126, %v2105, %v1461
      %v2140 = vsel %vm2126, %v2107, %v1463
      %v2142 = vsel %vm2126, %v2109, %v1465
      %v2144 = vsel %vm2126, %v2111, %v1467
      %v2146 = vsel %vm2126, %v2113, %v1469
      %v2148 = vsel %vm2126, %v2115, %v1471
      %v2150 = vsel %vm2126, %v2117, %v1473
      %v2152 = vsel %vm2126, %v2119, %v1475
      %v2154 = vsel %vm2126, %v2121, %v1477
      %v2156 = vsel %vm2126, %v2123, %v1479
      %v2158 = vsel %vm2126, %v2125, %v1481
      %vm2159 = vcmask 195584
      %v2161 = vsel %vm2159, %v2128, %v1563
      %v2163 = vsel %vm2159, %v2130, %v1565
      %v2165 = vsel %vm2159, %v2132, %v1567
      %v2167 = vsel %vm2159, %v2134, %v1569
      %v2169 = vsel %vm2159, %v2136, %v1571
      %v2171 = vsel %vm2159, %v2138, %v1573
      %v2173 = vsel %vm2159, %v2140, %v1575
      %v2175 = vsel %vm2159, %v2142, %v1577
      %v2177 = vsel %vm2159, %v2144, %v1579
      %v2179 = vsel %vm2159, %v2146, %v1581
      %v2181 = vsel %vm2159, %v2148, %v1583
      %v2183 = vsel %vm2159, %v2150, %v1585
      %v2185 = vsel %vm2159, %v2152, %v1587
      %v2187 = vsel %vm2159, %v2154, %v1589
      %v2189 = vsel %vm2159, %v2156, %v1591
      %v2191 = vsel %vm2159, %v2158, %v1593
      %vm2192 = vcmask 228352
      %v2194 = vsel %vm2192, %v2161, %v1835
      %v2196 = vsel %vm2192, %v2163, %v1837
      %v2198 = vsel %vm2192, %v2165, %v1839
      %v2200 = vsel %vm2192, %v2167, %v1841
      %v2202 = vsel %vm2192, %v2169, %v1843
      %v2204 = vsel %vm2192, %v2171, %v1845
      %v2206 = vsel %vm2192, %v2173, %v1847
      %v2208 = vsel %vm2192, %v2175, %v1849
      %v2210 = vsel %vm2192, %v2177, %v1851
      %v2212 = vsel %vm2192, %v2179, %v1853
      %v2214 = vsel %vm2192, %v2181, %v1855
      %v2216 = vsel %vm2192, %v2183, %v1857
      %v2218 = vsel %vm2192, %v2185, %v1859
      %v2220 = vsel %vm2192, %v2187, %v1861
      %v2222 = vsel %vm2192, %v2189, %v1863
      %v2224 = vsel %vm2192, %v2191, %v1865
      %vm2225 = vcmask 261120
      %v2227 = vsel %vm2225, %v2194, %v1963
      %v2229 = vsel %vm2225, %v2196, %v1965
      %v2231 = vsel %vm2225, %v2198, %v1967
      %v2233 = vsel %vm2225, %v2200, %v1969
      %v2235 = vsel %vm2225, %v2202, %v1971
      %v2237 = vsel %vm2225, %v2204, %v1973
      %v2239 = vsel %vm2225, %v2206, %v1975
      %v2241 = vsel %vm2225, %v2208, %v1977
      %v2243 = vsel %vm2225, %v2210, %v1979
      %v2245 = vsel %vm2225, %v2212, %v1981
      %v2247 = vsel %vm2225, %v2214, %v1983
      %v2249 = vsel %vm2225, %v2216, %v1985
      %v2251 = vsel %vm2225, %v2218, %v1987
      %v2253 = vsel %vm2225, %v2220, %v1989
      %v2255 = vsel %vm2225, %v2222, %v1991
      %v2257 = vsel %vm2225, %v2224, %v1993
      %v2258 = vld [vmem:[%s262] sm:$0xf]
      %v2259 = vld [vmem:[%s262 + $0x4] sm:$0xf]
      %v2260 = vld [vmem:[%s262 + $0x8] sm:$0xf]
      %v2261 = vld [vmem:[%s262 + $0xc] sm:$0xf]
      %v2262 = vld [vmem:[%s262 + $0x10] sm:$0x3]
      %v2268 = vunpack.c.l.b16 %v2258
      %v2269 = vunpack.c.l.b16 %v2259
      %v2270 = vunpack.c.l.b16 %v2260
      %v2271 = vunpack.c.l.b16 %v2261
      %v2272 = vunpack.c.l.b16 %v2262
      %v2273 = vpack.c.b16 %v2269, %v2268
      %v2274 = vpack.c.b16 %v2271, %v2270
      %v2275 = vpack.c.b16 %v2272, %v2272
      %vm2278 = vcmask 293888
      %v2279 = vsel %vm2278, %v2227, 0
      %v2281 = vsel %vm2278, %v2229, 0
      %v2283 = vsel %vm2278, %v2231, 0
      %v2285 = vsel %vm2278, %v2233, 0
      %v2287 = vsel %vm2278, %v2235, 0
      %v2289 = vsel %vm2278, %v2237, 0
      %v2291 = vsel %vm2278, %v2239, 0
      %v2293 = vsel %vm2278, %v2241, 0
      %v2295 = vsel %vm2278, %v2243, 0
      %v2297 = vsel %vm2278, %v2245, 0
      %v2299 = vsel %vm2278, %v2247, 0
      %v2301 = vsel %vm2278, %v2249, 0
      %v2303 = vsel %vm2278, %v2251, 0
      %v2305 = vsel %vm2278, %v2253, 0
      %v2307 = vsel %vm2278, %v2255, 0
      %v2309 = vsel %vm2278, %v2257, 0
      %vm2311 = vcmask 1041408
      %v2313 = vsel %vm2311, %v2275, 0
      %2315 = vmatprep.subr.bf16.mxu0 0
      %2316 = vmatpush1.bf16.msra.mxu0 %v2273
      %2317 = vmatprep.subr.bf16.mxu0 0
      %2318 = vmatpush1.bf16.msra.mxu0 %v2274
      %2319 = vmatprep.subr.bf16.mxu0 0
      %2320 = vmatpush1.bf16.msra.mxu0 %v2313
      %2321 = vmatprep.subr.bf16.mxu0 0
      %2322 = vmatpush1.bf16.msra.mxu0 0
      %2323 = vmatprep.subr.bf16.mxu0 0
      %2324 = vmatpush1.bf16.msra.mxu0 0
      %2325 = vmatprep.subr.bf16.mxu0 0
      %2326 = vmatpush1.bf16.msra.mxu0 0
      %2327 = vmatprep.subr.bf16.mxu0 0
      %2328 = vmatpush1.bf16.msra.mxu0 0
      %2329 = vmatprep.subr.bf16.mxu0 0
      %2330 = vmatpush1.bf16.msra.mxu0 0
      %2331 = vmatprep.subr.bf16.mxu0 0
      %2332 = vmatpush1.bf16.msra.mxu0 0
      %2333 = vmatprep.subr.bf16.mxu0 0
      %2334 = vmatpush1.bf16.msra.mxu0 0
      %2335 = vmatprep.subr.bf16.mxu0 0
      %2336 = vmatpush1.bf16.msra.mxu0 0
      %2337 = vmatprep.subr.bf16.mxu0 0
      %2338 = vmatpush1.bf16.msra.mxu0 0
      %2339 = vmatprep.subr.bf16.mxu0 0
      %2340 = vmatpush1.bf16.msra.mxu0 0
      %2341 = vmatprep.subr.bf16.mxu0 0
      %2342 = vmatpush1.bf16.msra.mxu0 0
      %2343 = vmatprep.subr.bf16.mxu0 0
      %2344 = vmatpush1.bf16.msra.mxu0 0
      %2345 = vmatprep.subr.bf16.mxu0 0
      %2346 = vmatpush1.bf16.msra.mxu0 0
      %2347 = vmatprep.mubr.bf16.mxu0 0
      %2348 = vmatmul.mubr.bf16.gmra.mrb[0].mxu0 %v2279
      %v2349 = vpop.f32.mrb[0].mxu0
      %v2350 = vadd.f32 0.0, %v2349
      %v2351 = vpop.f32.mrb[0].mxu0
      %v2352 = vpop.f32.mrb[0].mxu0
      %v2353 = vadd.f32 0.0, %v2352
      %v2354 = vpop.f32.mrb[0].mxu0
      %2355 = vmatprep.mubr.bf16.mxu0 0
      %2356 = vmatmul.mubr.bf16.gmra.mrb[0].mxu0 %v2281
      %v2357 = vpop.f32.mrb[0].mxu0
      %v2358 = vadd.f32 0.0, %v2357
      %v2359 = vpop.f32.mrb[0].mxu0
      %v2360 = vpop.f32.mrb[0].mxu0
      %v2361 = vadd.f32 0.0, %v2360
      %v2362 = vpop.f32.mrb[0].mxu0
      %2363 = vmatprep.mubr.bf16.mxu0 0
      %2364 = vmatmul.mubr.bf16.gmra.mrb[0].mxu0 %v2283
      %v2365 = vpop.f32.mrb[0].mxu0
      %v2366 = vadd.f32 0.0, %v2365
      %v2367 = vpop.f32.mrb[0].mxu0
      %v2368 = vpop.f32.mrb[0].mxu0
      %v2369 = vadd.f32 0.0, %v2368
      %v2370 = vpop.f32.mrb[0].mxu0
      %2371 = vmatprep.mubr.bf16.mxu0 0
      %2372 = vmatmul.mubr.bf16.gmra.mrb[0].mxu0 %v2285
      %v2373 = vpop.f32.mrb[0].mxu0
      %v2374 = vadd.f32 0.0, %v2373
      %v2375 = vpop.f32.mrb[0].mxu0
      %v2376 = vpop.f32.mrb[0].mxu0
      %v2377 = vadd.f32 0.0, %v2376
      %v2378 = vpop.f32.mrb[0].mxu0
      %2379 = vmatprep.mubr.bf16.mxu0 0
      %2380 = vmatmul.mubr.bf16.gmra.mrb[0].mxu0 %v2287
      %v2381 = vpop.f32.mrb[0].mxu0
      %v2382 = vadd.f32 0.0, %v2381
      %v2383 = vpop.f32.mrb[0].mxu0
      %v2384 = vpop.f32.mrb[0].mxu0
      %v2385 = vadd.f32 0.0, %v2384
      %v2386 = vpop.f32.mrb[0].mxu0
      %2387 = vmatprep.mubr.bf16.mxu0 0
      %2388 = vmatmul.mubr.bf16.gmra.mrb[0].mxu0 %v2289
      %v2389 = vpop.f32.mrb[0].mxu0
      %v2390 = vadd.f32 0.0, %v2389
      %v2391 = vpop.f32.mrb[0].mxu0
      %v2392 = vpop.f32.mrb[0].mxu0
      %v2393 = vadd.f32 0.0, %v2392
      %v2394 = vpop.f32.mrb[0].mxu0
      %2395 = vmatprep.mubr.bf16.mxu0 0
      %2396 = vmatmul.mubr.bf16.gmra.mrb[0].mxu0 %v2291
      %v2397 = vpop.f32.mrb[0].mxu0
      %v2398 = vadd.f32 0.0, %v2397
      %v2399 = vpop.f32.mrb[0].mxu0
      %v2400 = vpop.f32.mrb[0].mxu0
      %v2401 = vadd.f32 0.0, %v2400
      %v2402 = vpop.f32.mrb[0].mxu0
      %2403 = vmatprep.mubr.bf16.mxu0 0
      %2404 = vmatmul.mubr.bf16.gmra.mrb[0].mxu0 %v2293
      %v2405 = vpop.f32.mrb[0].mxu0
      %v2406 = vadd.f32 0.0, %v2405
      %v2407 = vpop.f32.mrb[0].mxu0
      %v2408 = vpop.f32.mrb[0].mxu0
      %v2409 = vadd.f32 0.0, %v2408
      %v2410 = vpop.f32.mrb[0].mxu0
      %2411 = vmatprep.mubr.bf16.mxu0 0
      %2412 = vmatmul.mubr.bf16.gmra.mrb[0].mxu0 %v2295
      %v2413 = vpop.f32.mrb[0].mxu0
      %v2414 = vadd.f32 0.0, %v2413
      %v2415 = vpop.f32.mrb[0].mxu0
      %v2416 = vpop.f32.mrb[0].mxu0
      %v2417 = vadd.f32 0.0, %v2416
      %v2418 = vpop.f32.mrb[0].mxu0
      %2419 = vmatprep.mubr.bf16.mxu0 0
      %2420 = vmatmul.mubr.bf16.gmra.mrb[0].mxu0 %v2297
      %v2421 = vpop.f32.mrb[0].mxu0
      %v2422 = vadd.f32 0.0, %v2421
      %v2423 = vpop.f32.mrb[0].mxu0
      %v2424 = vpop.f32.mrb[0].mxu0
      %v2425 = vadd.f32 0.0, %v2424
      %v2426 = vpop.f32.mrb[0].mxu0
      %2427 = vmatprep.mubr.bf16.mxu0 0
      %2428 = vmatmul.mubr.bf16.gmra.mrb[0].mxu0 %v2299
      %v2429 = vpop.f32.mrb[0].mxu0
      %v2430 = vadd.f32 0.0, %v2429
      %v2431 = vpop.f32.mrb[0].mxu0
      %v2432 = vpop.f32.mrb[0].mxu0
      %v2433 = vadd.f32 0.0, %v2432
      %v2434 = vpop.f32.mrb[0].mxu0
      %2435 = vmatprep.mubr.bf16.mxu0 0
      %2436 = vmatmul.mubr.bf16.gmra.mrb[0].mxu0 %v2301
      %v2437 = vpop.f32.mrb[0].mxu0
      %v2438 = vadd.f32 0.0, %v2437
      %v2439 = vpop.f32.mrb[0].mxu0
      %v2440 = vpop.f32.mrb[0].mxu0
      %v2441 = vadd.f32 0.0, %v2440
      %v2442 = vpop.f32.mrb[0].mxu0
      %2443 = vmatprep.mubr.bf16.mxu0 0
      %2444 = vmatmul.mubr.bf16.gmra.mrb[0].mxu0 %v2303
      %v2445 = vpop.f32.mrb[0].mxu0
      %v2446 = vadd.f32 0.0, %v2445
      %v2447 = vpop.f32.mrb[0].mxu0
      %v2448 = vpop.f32.mrb[0].mxu0
      %v2449 = vadd.f32 0.0, %v2448
      %v2450 = vpop.f32.mrb[0].mxu0
      %2451 = vmatprep.mubr.bf16.mxu0 0
      %2452 = vmatmul.mubr.bf16.gmra.mrb[0].mxu0 %v2305
      %v2453 = vpop.f32.mrb[0].mxu0
      %v2454 = vadd.f32 0.0, %v2453
      %v2455 = vpop.f32.mrb[0].mxu0
      %v2456 = vpop.f32.mrb[0].mxu0
      %v2457 = vadd.f32 0.0, %v2456
      %v2458 = vpop.f32.mrb[0].mxu0
      %2459 = vmatprep.mubr.bf16.mxu0 0
      %2460 = vmatmul.mubr.bf16.gmra.mrb[0].mxu0 %v2307
      %v2461 = vpop.f32.mrb[0].mxu0
      %v2462 = vadd.f32 0.0, %v2461
      %v2463 = vpop.f32.mrb[0].mxu0
      %v2464 = vpop.f32.mrb[0].mxu0
      %v2465 = vadd.f32 0.0, %v2464
      %v2466 = vpop.f32.mrb[0].mxu0
      %2467 = vmatprep.mubr.bf16.mxu0 0
      %2468 = vmatmul.mubr.bf16.gmra.mrb[0].mxu0 %v2309
      %v2469 = vpop.f32.mrb[0].mxu0
      %v2470 = vadd.f32 0.0, %v2469
      %v2471 = vpop.f32.mrb[0].mxu0
      %v2472 = vpop.f32.mrb[0].mxu0
      %v2473 = vadd.f32 0.0, %v2472
      %v2474 = vpop.f32.mrb[0].mxu0
      %2475 = vdwg.mxu0
      %v2476 = vld [vmem:[%s265] sm:$0x1]
      %v2478 = vlaneseq
      %v2479 = vshrl.u32 %v2478, 7
      %v2480 = vsub.s32 0, %v2479
      %v2481 = vrot.slane %v2476, %v2480
      %v2483 = vmul.f32 %v2350, %v2481
      %v2484 = vmul.f32 %v2353, %v2481
      %v2485 = vmul.f32 %v2358, %v2481
      %v2486 = vmul.f32 %v2361, %v2481
      %v2487 = vmul.f32 %v2366, %v2481
      %v2488 = vmul.f32 %v2369, %v2481
      %v2489 = vmul.f32 %v2374, %v2481
      %v2490 = vmul.f32 %v2377, %v2481
      %v2491 = vmul.f32 %v2382, %v2481
      %v2492 = vmul.f32 %v2385, %v2481
      %v2493 = vmul.f32 %v2390, %v2481
      %v2494 = vmul.f32 %v2393, %v2481
      %v2495 = vmul.f32 %v2398, %v2481
      %v2496 = vmul.f32 %v2401, %v2481
      %v2497 = vmul.f32 %v2406, %v2481
      %v2498 = vmul.f32 %v2409, %v2481
      %v2499 = vmul.f32 %v2414, %v2481
      %v2500 = vmul.f32 %v2417, %v2481
      %v2501 = vmul.f32 %v2422, %v2481
      %v2502 = vmul.f32 %v2425, %v2481
      %v2503 = vmul.f32 %v2430, %v2481
      %v2504 = vmul.f32 %v2433, %v2481
      %v2505 = vmul.f32 %v2438, %v2481
      %v2506 = vmul.f32 %v2441, %v2481
      %v2507 = vmul.f32 %v2446, %v2481
      %v2508 = vmul.f32 %v2449, %v2481
      %v2509 = vmul.f32 %v2454, %v2481
      %v2510 = vmul.f32 %v2457, %v2481
      %v2511 = vmul.f32 %v2462, %v2481
      %v2512 = vmul.f32 %v2465, %v2481
      %v2513 = vmul.f32 %v2470, %v2481
      %v2514 = vmul.f32 %v2473, %v2481
      %v2515 = vld [vmem:[%s268] sm:$0x1]
      %v2517 = vlaneseq
      %v2518 = vshrl.u32 %v2517, 7
      %v2519 = vsub.s32 0, %v2518
      %v2520 = vrot.slane %v2515, %v2519
      %v2522 = vadd.f32 %v2483, %v2520
      %v2523 = vadd.f32 %v2484, %v2520
      %v2524 = vadd.f32 %v2485, %v2520
      %v2525 = vadd.f32 %v2486, %v2520
      %v2526 = vadd.f32 %v2487, %v2520
      %v2527 = vadd.f32 %v2488, %v2520
      %v2528 = vadd.f32 %v2489, %v2520
      %v2529 = vadd.f32 %v2490, %v2520
      %v2530 = vadd.f32 %v2491, %v2520
      %v2531 = vadd.f32 %v2492, %v2520
      %v2532 = vadd.f32 %v2493, %v2520
      %v2533 = vadd.f32 %v2494, %v2520
      %v2534 = vadd.f32 %v2495, %v2520
      %v2535 = vadd.f32 %v2496, %v2520
      %v2536 = vadd.f32 %v2497, %v2520
      %v2537 = vadd.f32 %v2498, %v2520
      %v2538 = vadd.f32 %v2499, %v2520
      %v2539 = vadd.f32 %v2500, %v2520
      %v2540 = vadd.f32 %v2501, %v2520
      %v2541 = vadd.f32 %v2502, %v2520
      %v2542 = vadd.f32 %v2503, %v2520
      %v2543 = vadd.f32 %v2504, %v2520
      %v2544 = vadd.f32 %v2505, %v2520
      %v2545 = vadd.f32 %v2506, %v2520
      %v2546 = vadd.f32 %v2507, %v2520
      %v2547 = vadd.f32 %v2508, %v2520
      %v2548 = vadd.f32 %v2509, %v2520
      %v2549 = vadd.f32 %v2510, %v2520
      %v2550 = vadd.f32 %v2511, %v2520
      %v2551 = vadd.f32 %v2512, %v2520
      %v2552 = vadd.f32 %v2513, %v2520
      %v2553 = vadd.f32 %v2514, %v2520
      %v2554 = vmax.f32 %v2522, 0.0
      %v2555 = vmax.f32 %v2523, 0.0
      %v2556 = vmax.f32 %v2524, 0.0
      %v2557 = vmax.f32 %v2525, 0.0
      %v2558 = vmax.f32 %v2526, 0.0
      %v2559 = vmax.f32 %v2527, 0.0
      %v2560 = vmax.f32 %v2528, 0.0
      %v2561 = vmax.f32 %v2529, 0.0
      %v2562 = vmax.f32 %v2530, 0.0
      %v2563 = vmax.f32 %v2531, 0.0
      %v2564 = vmax.f32 %v2532, 0.0
      %v2565 = vmax.f32 %v2533, 0.0
      %v2566 = vmax.f32 %v2534, 0.0
      %v2567 = vmax.f32 %v2535, 0.0
      %v2568 = vmax.f32 %v2536, 0.0
      %v2569 = vmax.f32 %v2537, 0.0
      %v2570 = vmax.f32 %v2538, 0.0
      %v2571 = vmax.f32 %v2539, 0.0
      %v2572 = vmax.f32 %v2540, 0.0
      %v2573 = vmax.f32 %v2541, 0.0
      %v2574 = vmax.f32 %v2542, 0.0
      %v2575 = vmax.f32 %v2543, 0.0
      %v2576 = vmax.f32 %v2544, 0.0
      %v2577 = vmax.f32 %v2545, 0.0
      %v2578 = vmax.f32 %v2546, 0.0
      %v2579 = vmax.f32 %v2547, 0.0
      %v2580 = vmax.f32 %v2548, 0.0
      %v2581 = vmax.f32 %v2549, 0.0
      %v2582 = vmax.f32 %v2550, 0.0
      %v2583 = vmax.f32 %v2551, 0.0
      %v2584 = vmax.f32 %v2552, 0.0
      %v2585 = vmax.f32 %v2553, 0.0
      %v2586 = vpack.c.bf16 %v2555, %v2554
      %v2587 = vpack.c.bf16 %v2557, %v2556
      %v2588 = vpack.c.bf16 %v2559, %v2558
      %v2589 = vpack.c.bf16 %v2561, %v2560
      %v2590 = vpack.c.bf16 %v2563, %v2562
      %v2591 = vpack.c.bf16 %v2565, %v2564
      %v2592 = vpack.c.bf16 %v2567, %v2566
      %v2593 = vpack.c.bf16 %v2569, %v2568
      %v2594 = vpack.c.bf16 %v2571, %v2570
      %v2595 = vpack.c.bf16 %v2573, %v2572
      %v2596 = vpack.c.bf16 %v2575, %v2574
      %v2597 = vpack.c.bf16 %v2577, %v2576
      %v2598 = vpack.c.bf16 %v2579, %v2578
      %v2599 = vpack.c.bf16 %v2581, %v2580
      %v2600 = vpack.c.bf16 %v2583, %v2582
      %v2601 = vpack.c.bf16 %v2585, %v2584
      %v2618 = vunpack.c.l.b16 %v2586
      %v2619 = vunpack.c.h.b16 %v2586
      %v2620 = vunpack.c.l.b16 %v2587
      %v2621 = vunpack.c.h.b16 %v2587
      %v2622 = vunpack.c.l.b16 %v2588
      %v2623 = vunpack.c.h.b16 %v2588
      %v2624 = vunpack.c.l.b16 %v2589
      %v2625 = vunpack.c.h.b16 %v2589
      %v2626 = vunpack.c.l.b16 %v2590
      %v2627 = vunpack.c.h.b16 %v2590
      %v2628 = vunpack.c.l.b16 %v2591
      %v2629 = vunpack.c.h.b16 %v2591
      %v2630 = vunpack.c.l.b16 %v2592
      %v2631 = vunpack.c.h.b16 %v2592
      %v2632 = vunpack.c.l.b16 %v2593
      %v2633 = vunpack.c.h.b16 %v2593
      %v2634 = vunpack.c.l.b16 %v2594
      %v2635 = vunpack.c.h.b16 %v2594
      %v2636 = vunpack.c.l.b16 %v2595
      %v2637 = vunpack.c.h.b16 %v2595
      %v2638 = vunpack.c.l.b16 %v2596
      %v2639 = vunpack.c.h.b16 %v2596
      %v2640 = vunpack.c.l.b16 %v2597
      %v2641 = vunpack.c.h.b16 %v2597
      %v2642 = vunpack.c.l.b16 %v2598
      %v2643 = vunpack.c.h.b16 %v2598
      %v2644 = vunpack.c.l.b16 %v2599
      %v2645 = vunpack.c.h.b16 %v2599
      %v2646 = vunpack.c.l.b16 %v2600
      %v2647 = vunpack.c.h.b16 %v2600
      %v2648 = vunpack.c.l.b16 %v2601
      %v2649 = vunpack.c.h.b16 %v2601
      %v2650 = vpack.c.b16 %v2618, %v2618
      %v2651 = vpack.c.b16 %v2619, %v2619
      %v2652 = vpack.c.b16 %v2620, %v2620
      %v2653 = vpack.c.b16 %v2621, %v2621
      %v2654 = vpack.c.b16 %v2622, %v2622
      %v2655 = vpack.c.b16 %v2623, %v2623
      %v2656 = vpack.c.b16 %v2624, %v2624
      %v2657 = vpack.c.b16 %v2625, %v2625
      %v2658 = vpack.c.b16 %v2626, %v2626
      %v2659 = vpack.c.b16 %v2627, %v2627
      %v2660 = vpack.c.b16 %v2628, %v2628
      %v2661 = vpack.c.b16 %v2629, %v2629
      %v2662 = vpack.c.b16 %v2630, %v2630
      %v2663 = vpack.c.b16 %v2631, %v2631
      %v2664 = vpack.c.b16 %v2632, %v2632
      %v2665 = vpack.c.b16 %v2633, %v2633
      %v2666 = vpack.c.b16 %v2634, %v2634
      %v2667 = vpack.c.b16 %v2635, %v2635
      %v2668 = vpack.c.b16 %v2636, %v2636
      %v2669 = vpack.c.b16 %v2637, %v2637
      %v2670 = vpack.c.b16 %v2638, %v2638
      %v2671 = vpack.c.b16 %v2639, %v2639
      %v2672 = vpack.c.b16 %v2640, %v2640
      %v2673 = vpack.c.b16 %v2641, %v2641
      %v2674 = vpack.c.b16 %v2642, %v2642
      %v2675 = vpack.c.b16 %v2643, %v2643
      %v2676 = vpack.c.b16 %v2644, %v2644
      %v2677 = vpack.c.b16 %v2645, %v2645
      %v2678 = vpack.c.b16 %v2646, %v2646
      %v2679 = vpack.c.b16 %v2647, %v2647
      %v2680 = vpack.c.b16 %v2648, %v2648
      %v2681 = vpack.c.b16 %v2649, %v2649
      %2714 = vst [vmem:[%s281] sm:$0xf] %v2650
      %2715 = vst [vmem:[%s281 + $0x4] sm:$0xf] %v2651
      %2716 = vst [vmem:[%s281 + $0x8] sm:$0xf] %v2652
      %2717 = vst [vmem:[%s281 + $0xc] sm:$0xf] %v2653
      %2718 = vst [vmem:[%s281 + $0x10] sm:$0xf] %v2654
      %2719 = vst [vmem:[%s281 + $0x14] sm:$0xf] %v2655
      %2720 = vst [vmem:[%s281 + $0x18] sm:$0xf] %v2656
      %2721 = vst [vmem:[%s281 + $0x1c] sm:$0xf] %v2657
      %2722 = vst [vmem:[%s281 + $0x20] sm:$0xf] %v2658
      %2723 = vst [vmem:[%s281 + $0x24] sm:$0xf] %v2659
      %2724 = vst [vmem:[%s281 + $0x28] sm:$0xf] %v2660
      %2725 = vst [vmem:[%s281 + $0x2c] sm:$0xf] %v2661
      %2726 = vst [vmem:[%s281 + $0x30] sm:$0xf] %v2662
      %2727 = vst [vmem:[%s281 + $0x34] sm:$0xf] %v2663
      %2728 = vst [vmem:[%s281 + $0x38] sm:$0xf] %v2664
      %2729 = vst [vmem:[%s281 + $0x3c] sm:$0xf] %v2665
      %2730 = vst [vmem:[%s281 + $0x40] sm:$0xf] %v2666
      %2731 = vst [vmem:[%s281 + $0x44] sm:$0xf] %v2667
      %2732 = vst [vmem:[%s281 + $0x48] sm:$0xf] %v2668
      %2733 = vst [vmem:[%s281 + $0x4c] sm:$0xf] %v2669
      %2734 = vst [vmem:[%s281 + $0x50] sm:$0xf] %v2670
      %2735 = vst [vmem:[%s281 + $0x54] sm:$0xf] %v2671
      %2736 = vst [vmem:[%s281 + $0x58] sm:$0xf] %v2672
      %2737 = vst [vmem:[%s281 + $0x5c] sm:$0xf] %v2673
      %2738 = vst [vmem:[%s281 + $0x60] sm:$0xf] %v2674
      %2739 = vst [vmem:[%s281 + $0x64] sm:$0xf] %v2675
      %2740 = vst [vmem:[%s281 + $0x68] sm:$0xf] %v2676
      %2741 = vst [vmem:[%s281 + $0x6c] sm:$0xf] %v2677
      %2742 = vst [vmem:[%s281 + $0x70] sm:$0xf] %v2678
      %2743 = vst [vmem:[%s281 + $0x74] sm:$0xf] %v2679
      %2744 = vst [vmem:[%s281 + $0x78] sm:$0xf] %v2680
      %2745 = vst [vmem:[%s281 + $0x7c] sm:$0xf] %v2681
      %s2746 = smul.u32 16, %s21
      %p2747 = scmp.lt.s32.totalorder %s20, 1
      %s2748 = scalar_select %p2747, %s20, 1
      %p2749 = scmp.lt.s32.totalorder %s2746, 15
      %s2750 = scalar_select %p2749, %s2746, 15
      %p2751 = scmp.lt.s32.totalorder %s22, 0
      %s2752 = scalar_select %p2751, %s22, 0
      %s2753 = smul.addr %s2750, 2
      %s2754 = sadd.s32 %s2752, %s2753
      %s2755 = smul.addr %s2748, 32
      %s2756 = sadd.s32 %s2754, %s2755
      %s2757 = smul.addr %s2756, 4
      %s2758 = scalar_lea.vmem %s4, %s2757
      // Predicated region
      $region37: #{conv_bn_relu.1} parent=35 // pred_check
        %p2759 = pneg %p160
      $region38: #{conv_bn_relu.1} parent=35 // pred_check_branch
        %2761 = sbr.rel (%p2759) target = $region40
      $region39: #{conv_bn_relu.1} parent=35 // pred_region
        %s2762 = smul.u32 16, %s21
      $region40: #{conv_bn_relu.1} parent=35 // pred_fallthru
        _
    $region36: #{conv_bn_relu.1} parent=5 // pred_fallthru
      _
    %p2763 = scmp.le.s32.totalorder 2, %s10
    // Predicated region
    $region41: #{conv_bn_relu.1} parent=5 // pred_check
      %p2764 = pneg %p2763
    $region42: #{conv_bn_relu.1} parent=5 // pred_check_branch
      %2766 = sbr.rel (%p2764) target = $region44
    $region43: #{conv_bn_relu.1} parent=5 // pred_region
      %s2767 = ssub.s32 %s10, 2
      // Predicated region
      $region45: #{conv_bn_relu.1} parent=43 // pred_check
        %p2768 = pneg %p166
      $region46: #{conv_bn_relu.1} parent=43 // pred_check_branch
        %2770 = sbr.rel (%p2768) target = $region48
      $region47: #{conv_bn_relu.1} parent=43 // pred_region
        %s2771 = smul.u32 16, %s24
        %p2772 = scmp.lt.s32.totalorder %s23, 1
        %s2773 = scalar_select %p2772, %s23, 1
        %p2774 = scmp.lt.s32.totalorder %s2771, 15
        %s2775 = scalar_select %p2774, %s2771, 15
        %p2776 = scmp.lt.s32.totalorder %s25, 0
        %s2777 = scalar_select %p2776, %s25, 0
        %s2778 = smul.addr %s2775, 2
        %s2779 = sadd.s32 %s2777, %s2778
        %s2780 = smul.addr %s2773, 32
        %s2781 = sadd.s32 %s2779, %s2780
        %s2782 = smul.addr %s2781, 4
        %s2783 = scalar_lea.vmem %s4, %s2782
      $region48: #{conv_bn_relu.1} parent=43 // pred_fallthru
        _
    $region44: #{conv_bn_relu.1} parent=5 // pred_fallthru
      _
  $region6: #{conv_bn_relu.1} parent=0 // loop_footer
    %s14 = sadd.s32 1, %s10
  $region7: #{conv_bn_relu.1} parent=0 // loop_footer_branch
    %9 = sbr.rel target = $region3
  $region8: #{conv_bn_relu.1} parent=0 // loop_exit
    _

</llo_original>
